<compile_context>
chip_gen: v7x
topology: tpu7x:2x2x1
jax: 0.10.0
libtpu: 0.0.40
codegen_flags: <defaults>
</compile_context>

<pallas_src>
import jax
import jax.numpy as jnp
from jax.experimental import pallas as pl
from jax.experimental.pallas import tpu as pltpu


def _round_up(v, m):
    return (v + m - 1) // m * m


def _vmem_capacity_bytes():
    """Physical VMEM per TensorCore; conservative 64 MiB if the query fails."""
    try:
        info = pltpu.get_tpu_info()
        cap = getattr(info, "vmem_capacity_bytes", None)
        if cap:
            return int(cap)
    except Exception:
        pass
    return 64 * 1024 * 1024   # v7x-sized: safe on every current generation


def _gating_kernel(y_ref,    # (TM, 1)          int32 entity ids for this row tile
                   x_ref,    # (TM, H)          LSTM output rows
                   tbl_ref,  # (entity_num, 2H) [gate_theta | transE], VMEM resident
                   o_ref):   # (TM, H)          output tile
    idx = y_ref[...]                                    # (TM, 1) int32
    tm = idx.shape[0]
    entity_num = tbl_ref.shape[0]
    h = o_ref.shape[1]

    # In-kernel gather of TM rows of BOTH tables with one one-hot MXU matmul,
    # in the table's native dtype (f32 accumulation via preferred_element_type).
    # Note on partial last tiles: padded rows carry undefined ids; an
    # out-of-range id yields an all-zero one-hot row (no NaNs) and the masked
    # output store discards those rows -- intentionally NOT "fixed" into a
    # slower masked path.
    ent_ids = jax.lax.broadcasted_iota(jnp.int32, (tm, entity_num), 1)
    one_hot = (ent_ids == idx).astype(tbl_ref.dtype)    # (TM, entity_num)
    gathered = jnp.dot(one_hot, tbl_ref[...],
                       preferred_element_type=jnp.float32)   # (TM, 2H) f32

    theta = gathered[:, :h]                              # gate_theta[Y]
    y_emb = gathered[:, h:]                              # transE_embedding[Y]
    gate = jax.nn.sigmoid(theta)                         # EUP transcendental

    # gate*x + (1-gate)*y_emb  ==  y_emb + gate*(x - y_emb)  (3 VPU ops, not 4)
    o_ref[...] = (y_emb + gate * (x_ref[...] - y_emb)).astype(o_ref.dtype)


def _gating_reference(x, y_idx, gate_theta, transE_embedding):
    gate = jax.nn.sigmoid(gate_theta[y_idx])
    return gate * x + (1.0 - gate) * transE_embedding[y_idx]


def gating_mechanism(x, y_idx, gate_theta, transE_embedding, *, block_rows=1024):
    """x: [E, H] float, y_idx: [E] int, tables: [entity_num, H] float."""
    E, H = x.shape
    entity_num = gate_theta.shape[0]

    # Tiny batches: launch / grid-step overhead dominates; XLA's fused
    # gather+sigmoid+blend wins.
    if E < 64:
        return _gating_reference(x, y_idx, gate_theta, transE_embedding)

    # The one-hot MXU gather scales O(TM * entity_num); huge vocabularies need
    # a different gather strategy.
    # TODO(synk): manual make_async_copy DMA-gather path for huge entity tables.
    if entity_num > 8192:
        return _gating_reference(x, y_idx, gate_theta, transE_embedding)

    # Concatenate [gate_theta | transE] along H -> one VMEM-resident slab and a
    # single gather matmul per tile.  (Cache table_cat outside if called often.)
    cat_dtype = jnp.result_type(gate_theta.dtype, transE_embedding.dtype)
    table_cat = jnp.concatenate(
        [gate_theta.astype(cat_dtype), transE_embedding.astype(cat_dtype)], axis=1)
    tbl_itemsize = table_cat.dtype.itemsize
    table_bytes = entity_num * 2 * H * tbl_itemsize

    # ---- Row-tile size ------------------------------------------------------
    e_pad = _round_up(E, 8)
    # Aim for >= 8 grid steps (>= 4 per TensorCore on a 2-core v7x) so the
    # BlockSpec pipeline always has DMA/compute overlap; 256-row floor keeps
    # the ~0.35 us per-step overhead negligible.
    tm = min(block_rows, max(256, _round_up(pl.cdiv(E, 8), 8)), e_pad)
    # Keep the (TM, entity_num) one-hot intermediate under ~4 MiB.
    onehot_cap = max(8, (4 * 1024 * 1024 // (max(entity_num, 128) * tbl_itemsize)) // 8 * 8)
    tm = max(8, min(tm, onehot_cap))
    grid = (pl.cdiv(E, tm),)

    # ---- VMEM budget (generation aware) -------------------------------------
    vmem_cap = _vmem_capacity_bytes()
    x_bytes = x.dtype.itemsize
    stream_bytes = (2 * tm * H * x_bytes        # x tiles, double buffered
                    + 2 * tm * H * x_bytes      # out tiles, double buffered
                    + 2 * tm * 128 * 4)         # (TM,1) id tiles, lane padded
    onehot_bytes = tm * max(entity_num, 128) * tbl_itemsize
    f32_tmp_bytes = 6 * tm * H * 4              # gathered / gate / blend temporaries
    # Conservative: assume double-buffered tables in case pl.Buffered(1) is
    # unavailable and the default pipelining is used.
    needed = stream_bytes + 2 * table_bytes + onehot_bytes + f32_tmp_bytes + (2 << 20)
    if needed > vmem_cap - (4 << 20):
        # TODO(synk): DMA-gather path for tables that do not fit in VMEM.
        return _gating_reference(x, y_idx, gate_theta, transE_embedding)
    vmem_limit = int(min(max(needed, 32 << 20), vmem_cap - (2 << 20)))

    y2d = y_idx.astype(jnp.int32).reshape(E, 1)

    def run(single_buffer_table):
        # Constant index_map => the table block never changes across grid
        # steps; single buffering halves its resident footprint.
        tbl_kwargs = dict(pipeline_mode=pl.Buffered(1)) if single_buffer_table else {}
        grid_spec = pltpu.PrefetchScalarGridSpec(
            num_scalar_prefetch=0,
            grid=grid,
            in_specs=[
                pl.BlockSpec((tm, 1), lambda i: (i, 0)),              # entity ids
                pl.BlockSpec((tm, H), lambda i: (i, 0)),              # X rows
                pl.BlockSpec((entity_num, 2 * H), lambda i: (0, 0),   # tables, resident
                             **tbl_kwargs),
            ],
            out_specs=pl.BlockSpec((tm, H), lambda i: (i, 0)),
        )
        return pl.pallas_call(
            _gating_kernel,
            out_shape=jax.ShapeDtypeStruct((E, H), x.dtype),
            grid_spec=grid_spec,
            compiler_params=pltpu.CompilerParams(
                dimension_semantics=("parallel",),   # rows independent; v7x 2-TC shard
                vmem_limit_bytes=vmem_limit,
            ),
        )(y2d, x, table_cat)

    try:
        return run(True)
    except Exception:
        # JAX build without BlockSpec(pipeline_mode=...) support: fall back to
        # the default double-buffered table block (correct, slightly more VMEM).
        return run(False)


def _xavier_uniform(key, shape, dtype=jnp.float32):
    fan_out, fan_in = shape[0], shape[1]
    limit = (6.0 / (fan_in + fan_out)) ** 0.5
    return jax.random.uniform(key, shape, dtype, minval=-limit, maxval=limit)


if __name__ == "__main__":
    # Small, deterministic synthetic shapes consistent with the module:
    #   |E| = 2048 rows in the batch, hidden_dim H = 128, entity_num = 64.
    # Large enough to exercise the tiled path: TM=256 -> 8 grid steps.
    E, H, ENTITY_NUM = 2048, 128, 64

    key = jax.random.PRNGKey(0)
    k_x, k_theta, k_emb, k_idx = jax.random.split(key, 4)

    x = jax.random.normal(k_x, (E, H), dtype=jnp.float32)            # LSTM output |E| x H
    gate_theta = _xavier_uniform(k_theta, (ENTITY_NUM, H))           # learnable gate params
    transE_embedding = jax.random.normal(k_emb, (ENTITY_NUM, H),
                                         dtype=jnp.float32)          # frozen transE table
    y_idx = jax.random.randint(k_idx, (E,), 0, ENTITY_NUM,
                               dtype=jnp.int32)                      # entity ids |E|

    out = gating_mechanism(x, y_idx, gate_theta, transE_embedding)
    out = jax.block_until_ready(out)

    # Reference check in plain JAX (same math as the PyTorch forward).
    ref = _gating_reference(x, y_idx, gate_theta, transE_embedding)
    assert out.shape == (E, H)
    assert jnp.allclose(out, ref, atol=1e-5, rtol=1e-5)

    print("KERNEL_OK")
</pallas_src>

<mosaic_0001>
module attributes {stable_mosaic.version = 11 : i64} {
  func.func @_gating_kernel(%arg0: i32, %arg1: memref<256x1xi32, #tpu.memory_space<vmem>>, %arg2: memref<256x128xf32, #tpu.memory_space<vmem>>, %arg3: memref<64x256xf32, #tpu.memory_space<vmem>>, %arg4: memref<256x128xf32, #tpu.memory_space<vmem>>) attributes {dimension_semantics = [#tpu.dimension_semantics<parallel>], iteration_bounds = array<i64: 8>, scalar_prefetch = 0 : i64, scratch_operands = 0 : i64, tpu.core_type = #tpu.core_type<tc>, window_params = [{transform_indices = @transform_0, window_bounds = array<i64: 256, 1>}, {transform_indices = @transform_1, window_bounds = array<i64: 256, 128>}, {pipeline_mode = #tpu.pipeline_mode<synchronous>, transform_indices = @transform_2, window_bounds = array<i64: 64, 256>}, {transform_indices = @transform_3, window_bounds = array<i64: 256, 128>}]} {
    %c0 = arith.constant 0 : index
    %c0_0 = arith.constant 0 : index
    %0 = vector.load %arg1[%c0, %c0_0] : memref<256x1xi32, #tpu.memory_space<vmem>>, vector<256x1xi32>
    %1 = tpu.iota {dimensions = array<i32: 1>} : vector<256x64xi32>
    %2 = vector.broadcast %0 : vector<256x1xi32> to vector<256x64xi32>
    %3 = arith.cmpi eq, %1, %2 : vector<256x64xi32>
    %4 = arith.extui %3 : vector<256x64xi1> to vector<256x64xi32>
    %5 = arith.sitofp %4 : vector<256x64xi32> to vector<256x64xf32>
    %c0_1 = arith.constant 0 : index
    %c0_2 = arith.constant 0 : index
    %6 = vector.load %arg3[%c0_1, %c0_2] : memref<64x256xf32, #tpu.memory_space<vmem>>, vector<64x256xf32>
    %cst = arith.constant dense<0.000000e+00> : vector<256x256xf32>
    %7 = tpu.matmul %5, %6, %cst {dimension_numbers = #tpu.dot_dimension_numbers<[1], [0], [0], [1], [0, 0, 1, 1], [], []>} : vector<256x64xf32>, vector<64x256xf32>, vector<256x256xf32> -> vector<256x256xf32>
    %8 = vector.extract_strided_slice %7 {offsets = [0, 0], sizes = [256, 128], strides = [1, 1]} : vector<256x256xf32> to vector<256x128xf32>
    %9 = vector.extract_strided_slice %7 {offsets = [0, 128], sizes = [256, 128], strides = [1, 1]} : vector<256x256xf32> to vector<256x128xf32>
    %10 = arith.negf %8 : vector<256x128xf32>
    %11 = math.exp %10 : vector<256x128xf32>
    %cst_3 = arith.constant 1.000000e+00 : f32
    %12 = vector.broadcast %cst_3 : f32 to vector<256x128xf32>
    %13 = arith.addf %12, %11 : vector<256x128xf32>
    %14 = arith.divf %12, %13 : vector<256x128xf32>
    %c0_4 = arith.constant 0 : index
    %c0_5 = arith.constant 0 : index
    %15 = vector.load %arg2[%c0_4, %c0_5] : memref<256x128xf32, #tpu.memory_space<vmem>>, vector<256x128xf32>
    %16 = arith.subf %15, %9 : vector<256x128xf32>
    %17 = arith.mulf %14, %16 : vector<256x128xf32>
    %18 = arith.addf %9, %17 : vector<256x128xf32>
    %c0_6 = arith.constant 0 : index
    %c0_7 = arith.constant 0 : index
    %19 = vector.load %arg4[%c0_6, %c0_7] : memref<256x128xf32, #tpu.memory_space<vmem>>, vector<256x128xf32>
    tpu.vector_store %arg4[%c0_6, %c0_7], %18 {strides = array<i32>} : memref<256x128xf32, #tpu.memory_space<vmem>>, vector<256x128xf32>,
    return
  }
  func.func @transform_0(%arg0: i32) -> (i32, i32) {
    %c0_i32 = arith.constant 0 : i32
    %c0_i32_0 = arith.constant 0 : i32
    return %arg0, %c0_i32 : i32, i32
  }
  func.func @transform_1(%arg0: i32) -> (i32, i32) {
    %c0_i32 = arith.constant 0 : i32
    %c0_i32_0 = arith.constant 0 : i32
    return %arg0, %c0_i32 : i32, i32
  }
  func.func @transform_2(%arg0: i32) -> (i32, i32) {
    %c0_i32 = arith.constant 0 : i32
    %c0_i32_0 = arith.constant 0 : i32
    %c0_i32_1 = arith.constant 0 : i32
    return %c0_i32, %c0_i32_0 : i32, i32
  }
  func.func @transform_3(%arg0: i32) -> (i32, i32) {
    %c0_i32 = arith.constant 0 : i32
    %c0_i32_0 = arith.constant 0 : i32
    return %arg0, %c0_i32 : i32, i32
  }
}

module attributes {stable_mosaic.version = 11 : i64} {
  func.func @_gating_kernel(%arg0: i32, %arg1: memref<256x1xi32, #tpu.memory_space<vmem>>, %arg2: memref<256x128xf32, #tpu.memory_space<vmem>>, %arg3: memref<64x256xf32, #tpu.memory_space<vmem>>, %arg4: memref<256x128xf32, #tpu.memory_space<vmem>>) attributes {dimension_semantics = [#tpu.dimension_semantics<parallel>], iteration_bounds = array<i64: 8>, scalar_prefetch = 0 : i64, scratch_operands = 0 : i64, tpu.core_type = #tpu.core_type<tc>, window_params = [{transform_indices = @transform_0, window_bounds = array<i64: 256, 1>}, {transform_indices = @transform_1, window_bounds = array<i64: 256, 128>}, {pipeline_mode = #tpu.pipeline_mode<synchronous>, transform_indices = @transform_2, window_bounds = array<i64: 64, 256>}, {transform_indices = @transform_3, window_bounds = array<i64: 256, 128>}]} {
    %c0 = arith.constant 0 : index
    %c0_0 = arith.constant 0 : index
    %0 = vector.load %arg1[%c0, %c0_0] : memref<256x1xi32, #tpu.memory_space<vmem>>, vector<256x1xi32>
    %1 = tpu.iota {dimensions = array<i32: 1>} : vector<256x64xi32>
    %2 = vector.broadcast %0 : vector<256x1xi32> to vector<256x64xi32>
    %3 = arith.cmpi eq, %1, %2 : vector<256x64xi32>
    %4 = arith.extui %3 : vector<256x64xi1> to vector<256x64xi32>
    %5 = arith.sitofp %4 : vector<256x64xi32> to vector<256x64xf32>
    %c0_1 = arith.constant 0 : index
    %c0_2 = arith.constant 0 : index
    %6 = vector.load %arg3[%c0_1, %c0_2] : memref<64x256xf32, #tpu.memory_space<vmem>>, vector<64x256xf32>
    %cst = arith.constant dense<0.000000e+00> : vector<256x256xf32>
    %7 = tpu.matmul %5, %6, %cst {dimension_numbers = #tpu.dot_dimension_numbers<[1], [0], [0], [1], [0, 0, 1, 1], [], []>} : vector<256x64xf32>, vector<64x256xf32>, vector<256x256xf32> -> vector<256x256xf32>
    %8 = vector.extract_strided_slice %7 {offsets = [0, 0], sizes = [256, 128], strides = [1, 1]} : vector<256x256xf32> to vector<256x128xf32>
    %9 = vector.extract_strided_slice %7 {offsets = [0, 128], sizes = [256, 128], strides = [1, 1]} : vector<256x256xf32> to vector<256x128xf32>
    %10 = arith.negf %8 : vector<256x128xf32>
    %11 = math.exp %10 : vector<256x128xf32>
    %cst_3 = arith.constant 1.000000e+00 : f32
    %12 = vector.broadcast %cst_3 : f32 to vector<256x128xf32>
    %13 = arith.addf %12, %11 : vector<256x128xf32>
    %14 = arith.divf %12, %13 : vector<256x128xf32>
    %c0_4 = arith.constant 0 : index
    %c0_5 = arith.constant 0 : index
    %15 = vector.load %arg2[%c0_4, %c0_5] : memref<256x128xf32, #tpu.memory_space<vmem>>, vector<256x128xf32>
    %16 = arith.subf %15, %9 : vector<256x128xf32>
    %17 = arith.mulf %14, %16 : vector<256x128xf32>
    %18 = arith.addf %9, %17 : vector<256x128xf32>
    %c0_6 = arith.constant 0 : index
    %c0_7 = arith.constant 0 : index
    %19 = vector.load %arg4[%c0_6, %c0_7] : memref<256x128xf32, #tpu.memory_space<vmem>>, vector<256x128xf32>
    tpu.vector_store %arg4[%c0_6, %c0_7], %18 {strides = array<i32>} : memref<256x128xf32, #tpu.memory_space<vmem>>, vector<256x128xf32>,
    return
  }
  func.func @transform_0(%arg0: i32) -> (i32, i32) {
    %c0_i32 = arith.constant 0 : i32
    %c0_i32_0 = arith.constant 0 : i32
    return %arg0, %c0_i32 : i32, i32
  }
  func.func @transform_1(%arg0: i32) -> (i32, i32) {
    %c0_i32 = arith.constant 0 : i32
    %c0_i32_0 = arith.constant 0 : i32
    return %arg0, %c0_i32 : i32, i32
  }
  func.func @transform_2(%arg0: i32) -> (i32, i32) {
    %c0_i32 = arith.constant 0 : i32
    %c0_i32_0 = arith.constant 0 : i32
    %c0_i32_1 = arith.constant 0 : i32
    return %c0_i32, %c0_i32_0 : i32, i32
  }
  func.func @transform_3(%arg0: i32) -> (i32, i32) {
    %c0_i32 = arith.constant 0 : i32
    %c0_i32_0 = arith.constant 0 : i32
    return %arg0, %c0_i32 : i32, i32
  }
}

</mosaic_0001>

<llo_original>
// kernel: tpu_custom_call.1
$region0: #{tpu_custom_call.1}
  #allocation0 [shape = 'u32[]', space=smem, size = 0x4, offset = 0x4, fixed_abs, tag = 'smem constant byte address 0x4 - core index']
  #allocation1 [shape = 'u32[144,128]{1,0:T(1,128)}', space=vmem, size = 0x12000, scoped, tag = 'internal scratch']
  %s0 = inlined_call_operand.vmem [shape: s32[2048,1], index: 0, kind: input, shape index: {}]
  %s1 = inlined_call_operand.vmem [shape: f32[2048,128], index: 1, kind: input, shape index: {}]
  %s2 = inlined_call_operand.hbm [shape: f32[64,256], index: 2, kind: input, shape index: {}]
  %s3 = inlined_call_operand.hbm [shape: f32[2048,128], index: 3, kind: output, shape index: {}]
  %s4 = sld [smem:[#allocation0]]
  $region49: #{tpu_custom_call.1} parent=0
    _
  %s6 = ssub.s32 1, %s4
  %s7 = scalar_select 0, %s6, %s4
  $region1: #{tpu_custom_call.1} parent=0
    #allocation2 [shape = 'u8[65536]{0}', space=vmem, size = 0x10000, scoped, tag = 'input window, operand 2, single buffered']
    #allocation3 [shape = 's32[2]{0}', space=sflag, size = 0x8, scoped, tag = 'scoped memory for tpu_custom_call.1']
    #allocation4 [shape = 's32[2]{0}', space=sflag, size = 0x8, scoped, tag = 'scoped memory for tpu_custom_call.1']
    #allocation5 [shape = 'u8[262144]{0}', space=vmem, size = 0x40000, scoped, tag = 'output window, operand 0']
    %8 = vsyncpa [#allocation3], 0
    %9 = vsyncpa [#allocation4], 0
    %s10 = scalar_lea.sflag [#allocation4], 1
    %11 = vsyncpa %s10, 0
    loop: start=0, step=1, limit=10
    $region2: #{tpu_custom_call.1} parent=1 // loop_pre_header
      _
    $region3: #{tpu_custom_call.1} parent=1 // loop_header
      %s13 = sphi 0, %s17
      %p14 = scmp.ge.s32.totalorder %s13, 10
      %s23 = sphi 0, %s25
      %s26 = sphi 0, %s23
      %s27 = sphi 0, %s26
      %s43 = sphi 0, %s27
      %s49 = sphi 0, %s51
      %s52 = sphi 0, %s49
      %s53 = sphi 0, %s52
      %s69 = sphi 0, %s53
      %s73 = sphi 0, %s73
      %s75 = sphi 0, %s73
      %s76 = sphi 0, %s75
      %s90 = sphi 0, %s76
      %s96 = sphi 0, %s98
      %s99 = sphi 0, %s96
      %s100 = sphi 0, %s99
      %s116 = sphi 0, %s100
    $region4: #{tpu_custom_call.1} parent=1 // loop_header_branch
      %16 = sbr.rel (%p14) target = $region8
    $region5: #{tpu_custom_call.1} parent=1 // loop_body
      %s18 = ssub.s32 %s13, 1
      %s19 = ssub.s32 %s13, 2
      %s20 = sadd.s32 %s13, 1
      %s21 = ssub.s32 %s13, %s20
      %p22 = scmp.eq.s32.totalorder %s21, 0
      %s24 = sadd.s32 %s23, 1
      %s25 = scalar_select %p22, %s23, %s24
      %p28 = pneg %p22
      %p29 = scmp.eq.s32.totalorder %s13, 7
      %p30 = por %p28, %p29
      %p31 = scmp.ne.s32.totalorder %s23, %s26
      %p32 = scmp.eq.s32.totalorder %s13, 0
      %p33 = por %p31, %p32
      %p34 = scmp.ne.s32.totalorder %s23, %s26
      %p35 = scmp.eq.s32.totalorder %s18, 7
      %p36 = por %p34, %p35
      %p37 = scmp.ne.s32.totalorder %s26, %s27
      %p38 = scmp.eq.s32.totalorder %s18, 0
      %p39 = por %p37, %p38
      %p40 = scmp.ne.s32.totalorder %s26, %s27
      %p41 = scmp.eq.s32.totalorder %s19, 7
      %p42 = por %p40, %p41
      %p44 = scmp.ne.s32.totalorder %s27, %s43
      %p45 = scmp.eq.s32.totalorder %s19, 0
      %p46 = por %p44, %p45
      %s47 = ssub.s32 %s13, %s20
      %p48 = scmp.eq.s32.totalorder %s47, 0
      %s50 = sadd.s32 %s49, 1
      %s51 = scalar_select %p48, %s49, %s50
      %p54 = pneg %p48
      %p55 = scmp.eq.s32.totalorder %s13, 7
      %p56 = por %p54, %p55
      %p57 = scmp.ne.s32.totalorder %s49, %s52
      %p58 = scmp.eq.s32.totalorder %s13, 0
      %p59 = por %p57, %p58
      %p60 = scmp.ne.s32.totalorder %s49, %s52
      %p61 = scmp.eq.s32.totalorder %s18, 7
      %p62 = por %p60, %p61
      %p63 = scmp.ne.s32.totalorder %s52, %s53
      %p64 = scmp.eq.s32.totalorder %s18, 0
      %p65 = por %p63, %p64
      %p66 = scmp.ne.s32.totalorder %s52, %s53
      %p67 = scmp.eq.s32.totalorder %s19, 7
      %p68 = por %p66, %p67
      %p70 = scmp.ne.s32.totalorder %s53, %s69
      %p71 = scmp.eq.s32.totalorder %s19, 0
      %p72 = por %p70, %p71
      %s74 = sadd.s32 %s73, 1
      %p77 = scmp.eq.s32.totalorder %s13, 7
      %p78 = scmp.ne.s32.totalorder %s73, %s75
      %p79 = scmp.eq.s32.totalorder %s13, 0
      %p80 = por %p78, %p79
      %p81 = scmp.ne.s32.totalorder %s73, %s75
      %p82 = scmp.eq.s32.totalorder %s18, 7
      %p83 = por %p81, %p82
      %p84 = scmp.ne.s32.totalorder %s75, %s76
      %p85 = scmp.eq.s32.totalorder %s18, 0
      %p86 = por %p84, %p85
      %p87 = scmp.ne.s32.totalorder %s75, %s76
      %p88 = scmp.eq.s32.totalorder %s19, 7
      %p89 = por %p87, %p88
      %p91 = scmp.ne.s32.totalorder %s76, %s90
      %p92 = scmp.eq.s32.totalorder %s19, 0
      %p93 = por %p91, %p92
      %s94 = ssub.s32 %s13, %s20
      %p95 = scmp.eq.s32.totalorder %s94, 0
      %s97 = sadd.s32 %s96, 1
      %s98 = scalar_select %p95, %s96, %s97
      %p101 = pneg %p95
      %p102 = scmp.eq.s32.totalorder %s13, 7
      %p103 = por %p101, %p102
      %p104 = scmp.ne.s32.totalorder %s96, %s99
      %p105 = scmp.eq.s32.totalorder %s13, 0
      %p106 = por %p104, %p105
      %p107 = scmp.ne.s32.totalorder %s96, %s99
      %p108 = scmp.eq.s32.totalorder %s18, 7
      %p109 = por %p107, %p108
      %p110 = scmp.ne.s32.totalorder %s99, %s100
      %p111 = scmp.eq.s32.totalorder %s18, 0
      %p112 = por %p110, %p111
      %p113 = scmp.ne.s32.totalorder %s99, %s100
      %p114 = scmp.eq.s32.totalorder %s19, 7
      %p115 = por %p113, %p114
      %p117 = scmp.ne.s32.totalorder %s100, %s116
      %p118 = scmp.eq.s32.totalorder %s19, 0
      %p119 = por %p117, %p118
      %p120 = scmp.le.s32.totalorder 1, %s13
      %p121 = scmp.lt.s32.totalorder %s13, 9
      %p122 = pnand %p120, %p121
      %p123 = pneg %p122
      // Predicated region
      $region9: #{tpu_custom_call.1} parent=5 // pred_check
        _
      $region10: #{tpu_custom_call.1} parent=5 // pred_check_branch
        %125 = sbr.rel (%p122) target = $region12
      $region11: #{tpu_custom_call.1} parent=5 // pred_region
        %s126 = ssub.s32 %s13, 1
        // Predicated region
        $region13: #{tpu_custom_call.1} parent=11 // pred_check
          %p127 = pneg %p86
        $region14: #{tpu_custom_call.1} parent=11 // pred_check_branch
          %129 = sbr.rel (%p127) target = $region16
        $region15: #{tpu_custom_call.1} parent=11 // pred_region
          %s131 = ssub.s32 2048, 2048
          %132 = vsyncadd [#allocation3], %s131
          %s133 = sshll.u32 [#allocation2], 4
          %s134 = int_to_ptr.vmem [resolvable:$true] %s133
          %139 = dma.hbm_to_vmem [thread:$0]  %s2, 2048, %s134, [#allocation3], 256, 256, 16
        $region16: #{tpu_custom_call.1} parent=11 // pred_fallthru
          _
      $region12: #{tpu_custom_call.1} parent=5 // pred_fallthru
        _
      %p140 = scmp.lt.s32.totalorder %s13, 8
      // Predicated region
      $region17: #{tpu_custom_call.1} parent=5 // pred_check
        %p141 = pneg %p140
      $region18: #{tpu_custom_call.1} parent=5 // pred_check_branch
        %143 = sbr.rel (%p141) target = $region20
      $region19: #{tpu_custom_call.1} parent=5 // pred_region
        // Predicated region
        $region21: #{tpu_custom_call.1} parent=19 // pred_check
          %p144 = pneg %p33
        $region22: #{tpu_custom_call.1} parent=19 // pred_check_branch
          %146 = sbr.rel (%p144) target = $region24
        $region23: #{tpu_custom_call.1} parent=19 // pred_region
          %s147 = smul.u32 32, %s13
          %p148 = scmp.lt.s32.totalorder %s147, 255
          %s149 = scalar_select %p148, %s147, 255
          %s150 = smul.addr %s149, 8
          %s151 = scalar_lea.vmem %s0, %s150
          %s152 = smul.u32 32, %s13
        $region24: #{tpu_custom_call.1} parent=19 // pred_fallthru
          _
        // Predicated region
        $region25: #{tpu_custom_call.1} parent=19 // pred_check
          %p153 = pneg %p59
        $region26: #{tpu_custom_call.1} parent=19 // pred_check_branch
          %155 = sbr.rel (%p153) target = $region28
        $region27: #{tpu_custom_call.1} parent=19 // pred_region
          %s156 = smul.u32 32, %s13
          %p157 = scmp.lt.s32.totalorder %s156, 255
          %s158 = scalar_select %p157, %s156, 255
          %s159 = smul.addr %s158, 8
          %s160 = scalar_lea.vmem %s1, %s159
          %s161 = smul.u32 32, %s13
        $region28: #{tpu_custom_call.1} parent=19 // pred_fallthru
          _
      $region20: #{tpu_custom_call.1} parent=5 // pred_fallthru
        _
      %p162 = scmp.le.s32.totalorder 1, %s13
      %p163 = scmp.lt.s32.totalorder %s13, 9
      %p164 = pnand %p162, %p163
      %p165 = pneg %p164
      // Predicated region
      $region29: #{tpu_custom_call.1} parent=5 // pred_check
        _
      $region30: #{tpu_custom_call.1} parent=5 // pred_check_branch
        %167 = sbr.rel (%p164) target = $region32
      $region31: #{tpu_custom_call.1} parent=5 // pred_region
        %s168 = ssub.s32 %s13, 1
        // Predicated region
        $region33: #{tpu_custom_call.1} parent=31 // pred_check
          %p169 = pneg %p86
        $region34: #{tpu_custom_call.1} parent=31 // pred_check_branch
          %171 = sbr.rel (%p169) target = $region36
        $region35: #{tpu_custom_call.1} parent=31 // pred_region
          %172 = dma.done [#allocation3], 2048
        $region36: #{tpu_custom_call.1} parent=31 // pred_fallthru
          _
        %s173 = smul.u32 32, %s18
        %p174 = scmp.lt.s32.totalorder %s173, 255
        %s175 = scalar_select %p174, %s173, 255
        %s176 = smul.addr %s175, 8
        %s177 = scalar_lea.vmem %s0, %s176
        %p178 = pneg %p39
        %p179 = pneg %p36
        %s180 = smul.u32 32, %s18
        %p181 = scmp.lt.s32.totalorder %s180, 255
        %s182 = scalar_select %p181, %s180, 255
        %s183 = smul.addr %s182, 8
        %s184 = scalar_lea.vmem %s1, %s183
        %p185 = pneg %p65
        %p186 = pneg %p62
        %p187 = pneg %p86
        %p188 = pneg %p83
        %p189 = pneg %p112
        %p190 = pneg %p109
        %s191 = sand.u32 %s99, 1
        %s192 = scalar_lea.sflag [#allocation4], %s191
        %s193 = sand.u32 %s99, 1
        %s194 = smul.addr %s193, 256
        %s195 = scalar_lea.vmem [#allocation5], %s194
        %s196 = smul.u32 32, %s18
        %p197 = scmp.lt.s32.totalorder %s196, 255
        %s198 = scalar_select %p197, %s196, 255
        %s199 = smul.addr %s198, 8
        %s200 = scalar_lea.vmem %s0, %s199
        %s201 = smul.u32 32, %s18
        %s202 = smul.u32 32, %s18
        %p203 = scmp.lt.s32.totalorder %s202, 255
        %s204 = scalar_select %p203, %s202, 255
        %s205 = smul.addr %s204, 8
        %s206 = scalar_lea.vmem %s1, %s205
        %s207 = smul.u32 32, %s18
        %s208 = smul.u32 32, %s18
        %v209 = vld [vmem:[%s200] sm:$0xff]
        %v210 = vld [vmem:[%s200 + $0x8] sm:$0xff]
        %v211 = vld [vmem:[%s200 + $0x10] sm:$0xff]
        %v212 = vld [vmem:[%s200 + $0x18] sm:$0xff]
        %v213 = vld [vmem:[%s200 + $0x20] sm:$0xff]
        %v214 = vld [vmem:[%s200 + $0x28] sm:$0xff]
        %v215 = vld [vmem:[%s200 + $0x30] sm:$0xff]
        %v216 = vld [vmem:[%s200 + $0x38] sm:$0xff]
        %v217 = vld [vmem:[%s200 + $0x40] sm:$0xff]
        %v218 = vld [vmem:[%s200 + $0x48] sm:$0xff]
        %v219 = vld [vmem:[%s200 + $0x50] sm:$0xff]
        %v220 = vld [vmem:[%s200 + $0x58] sm:$0xff]
        %v221 = vld [vmem:[%s200 + $0x60] sm:$0xff]
        %v222 = vld [vmem:[%s200 + $0x68] sm:$0xff]
        %v223 = vld [vmem:[%s200 + $0x70] sm:$0xff]
        %v224 = vld [vmem:[%s200 + $0x78] sm:$0xff]
        %v225 = vld [vmem:[%s200 + $0x80] sm:$0xff]
        %v226 = vld [vmem:[%s200 + $0x88] sm:$0xff]
        %v227 = vld [vmem:[%s200 + $0x90] sm:$0xff]
        %v228 = vld [vmem:[%s200 + $0x98] sm:$0xff]
        %v229 = vld [vmem:[%s200 + $0xa0] sm:$0xff]
        %v230 = vld [vmem:[%s200 + $0xa8] sm:$0xff]
        %v231 = vld [vmem:[%s200 + $0xb0] sm:$0xff]
        %v232 = vld [vmem:[%s200 + $0xb8] sm:$0xff]
        %v233 = vld [vmem:[%s200 + $0xc0] sm:$0xff]
        %v234 = vld [vmem:[%s200 + $0xc8] sm:$0xff]
        %v235 = vld [vmem:[%s200 + $0xd0] sm:$0xff]
        %v236 = vld [vmem:[%s200 + $0xd8] sm:$0xff]
        %v237 = vld [vmem:[%s200 + $0xe0] sm:$0xff]
        %v238 = vld [vmem:[%s200 + $0xe8] sm:$0xff]
        %v239 = vld [vmem:[%s200 + $0xf0] sm:$0xff]
        %v240 = vld [vmem:[%s200 + $0xf8] sm:$0xff]
        %v241 = vlaneseq
        %v242 = vand.u32 %v241, 127
        %243 = vset.pattern.permute.xlu0 0
        %244 = vperm.xlu0 %243, %v209
        %v245 = vpop.permute.xlu0 %244
        %246 = vset.pattern.permute.xlu0 0
        %247 = vperm.xlu0 %246, %v210
        %v248 = vpop.permute.xlu0 %247
        %249 = vset.pattern.permute.xlu0 0
        %250 = vperm.xlu0 %249, %v211
        %v251 = vpop.permute.xlu0 %250
        %252 = vset.pattern.permute.xlu0 0
        %253 = vperm.xlu0 %252, %v212
        %v254 = vpop.permute.xlu0 %253
        %255 = vset.pattern.permute.xlu0 0
        %256 = vperm.xlu0 %255, %v213
        %v257 = vpop.permute.xlu0 %256
        %258 = vset.pattern.permute.xlu0 0
        %259 = vperm.xlu0 %258, %v214
        %v260 = vpop.permute.xlu0 %259
        %261 = vset.pattern.permute.xlu0 0
        %262 = vperm.xlu0 %261, %v215
        %v263 = vpop.permute.xlu0 %262
        %264 = vset.pattern.permute.xlu0 0
        %265 = vperm.xlu0 %264, %v216
        %v266 = vpop.permute.xlu0 %265
        %267 = vset.pattern.permute.xlu0 0
        %268 = vperm.xlu0 %267, %v217
        %v269 = vpop.permute.xlu0 %268
        %270 = vset.pattern.permute.xlu0 0
        %271 = vperm.xlu0 %270, %v218
        %v272 = vpop.permute.xlu0 %271
        %273 = vset.pattern.permute.xlu0 0
        %274 = vperm.xlu0 %273, %v219
        %v275 = vpop.permute.xlu0 %274
        %276 = vset.pattern.permute.xlu0 0
        %277 = vperm.xlu0 %276, %v220
        %v278 = vpop.permute.xlu0 %277
        %279 = vset.pattern.permute.xlu0 0
        %280 = vperm.xlu0 %279, %v221
        %v281 = vpop.permute.xlu0 %280
        %282 = vset.pattern.permute.xlu0 0
        %283 = vperm.xlu0 %282, %v222
        %v284 = vpop.permute.xlu0 %283
        %285 = vset.pattern.permute.xlu0 0
        %286 = vperm.xlu0 %285, %v223
        %v287 = vpop.permute.xlu0 %286
        %288 = vset.pattern.permute.xlu0 0
        %289 = vperm.xlu0 %288, %v224
        %v290 = vpop.permute.xlu0 %289
        %291 = vset.pattern.permute.xlu0 0
        %292 = vperm.xlu0 %291, %v225
        %v293 = vpop.permute.xlu0 %292
        %294 = vset.pattern.permute.xlu0 0
        %295 = vperm.xlu0 %294, %v226
        %v296 = vpop.permute.xlu0 %295
        %297 = vset.pattern.permute.xlu0 0
        %298 = vperm.xlu0 %297, %v227
        %v299 = vpop.permute.xlu0 %298
        %300 = vset.pattern.permute.xlu0 0
        %301 = vperm.xlu0 %300, %v228
        %v302 = vpop.permute.xlu0 %301
        %303 = vset.pattern.permute.xlu0 0
        %304 = vperm.xlu0 %303, %v229
        %v305 = vpop.permute.xlu0 %304
        %306 = vset.pattern.permute.xlu0 0
        %307 = vperm.xlu0 %306, %v230
        %v308 = vpop.permute.xlu0 %307
        %309 = vset.pattern.permute.xlu0 0
        %310 = vperm.xlu0 %309, %v231
        %v311 = vpop.permute.xlu0 %310
        %312 = vset.pattern.permute.xlu0 0
        %313 = vperm.xlu0 %312, %v232
        %v314 = vpop.permute.xlu0 %313
        %315 = vset.pattern.permute.xlu0 0
        %316 = vperm.xlu0 %315, %v233
        %v317 = vpop.permute.xlu0 %316
        %318 = vset.pattern.permute.xlu0 0
        %319 = vperm.xlu0 %318, %v234
        %v320 = vpop.permute.xlu0 %319
        %321 = vset.pattern.permute.xlu0 0
        %322 = vperm.xlu0 %321, %v235
        %v323 = vpop.permute.xlu0 %322
        %324 = vset.pattern.permute.xlu0 0
        %325 = vperm.xlu0 %324, %v236
        %v326 = vpop.permute.xlu0 %325
        %327 = vset.pattern.permute.xlu0 0
        %328 = vperm.xlu0 %327, %v237
        %v329 = vpop.permute.xlu0 %328
        %330 = vset.pattern.permute.xlu0 0
        %331 = vperm.xlu0 %330, %v238
        %v332 = vpop.permute.xlu0 %331
        %333 = vset.pattern.permute.xlu0 0
        %334 = vperm.xlu0 %333, %v239
        %v335 = vpop.permute.xlu0 %334
        %336 = vset.pattern.permute.xlu0 0
        %337 = vperm.xlu0 %336, %v240
        %v338 = vpop.permute.xlu0 %337
        %vm339 = vcmp.eq.s32.totalorder %v242, %v245
        %vm340 = vcmp.eq.s32.totalorder %v242, %v248
        %vm341 = vcmp.eq.s32.totalorder %v242, %v251
        %vm342 = vcmp.eq.s32.totalorder %v242, %v254
        %vm343 = vcmp.eq.s32.totalorder %v242, %v257
        %vm344 = vcmp.eq.s32.totalorder %v242, %v260
        %vm345 = vcmp.eq.s32.totalorder %v242, %v263
        %vm346 = vcmp.eq.s32.totalorder %v242, %v266
        %vm347 = vcmp.eq.s32.totalorder %v242, %v269
        %vm348 = vcmp.eq.s32.totalorder %v242, %v272
        %vm349 = vcmp.eq.s32.totalorder %v242, %v275
        %vm350 = vcmp.eq.s32.totalorder %v242, %v278
        %vm351 = vcmp.eq.s32.totalorder %v242, %v281
        %vm352 = vcmp.eq.s32.totalorder %v242, %v284
        %vm353 = vcmp.eq.s32.totalorder %v242, %v287
        %vm354 = vcmp.eq.s32.totalorder %v242, %v290
        %vm355 = vcmp.eq.s32.totalorder %v242, %v293
        %vm356 = vcmp.eq.s32.totalorder %v242, %v296
        %vm357 = vcmp.eq.s32.totalorder %v242, %v299
        %vm358 = vcmp.eq.s32.totalorder %v242, %v302
        %vm359 = vcmp.eq.s32.totalorder %v242, %v305
        %vm360 = vcmp.eq.s32.totalorder %v242, %v308
        %vm361 = vcmp.eq.s32.totalorder %v242, %v311
        %vm362 = vcmp.eq.s32.totalorder %v242, %v314
        %vm363 = vcmp.eq.s32.totalorder %v242, %v317
        %vm364 = vcmp.eq.s32.totalorder %v242, %v320
        %vm365 = vcmp.eq.s32.totalorder %v242, %v323
        %vm366 = vcmp.eq.s32.totalorder %v242, %v326
        %vm367 = vcmp.eq.s32.totalorder %v242, %v329
        %vm368 = vcmp.eq.s32.totalorder %v242, %v332
        %vm369 = vcmp.eq.s32.totalorder %v242, %v335
        %vm370 = vcmp.eq.s32.totalorder %v242, %v338
        %v371 = vsel %vm339, 1, 0
        %v372 = vsel %vm340, 1, 0
        %v373 = vsel %vm341, 1, 0
        %v374 = vsel %vm342, 1, 0
        %v375 = vsel %vm343, 1, 0
        %v376 = vsel %vm344, 1, 0
        %v377 = vsel %vm345, 1, 0
        %v378 = vsel %vm346, 1, 0
        %v379 = vsel %vm347, 1, 0
        %v380 = vsel %vm348, 1, 0
        %v381 = vsel %vm349, 1, 0
        %v382 = vsel %vm350, 1, 0
        %v383 = vsel %vm351, 1, 0
        %v384 = vsel %vm352, 1, 0
        %v385 = vsel %vm353, 1, 0
        %v386 = vsel %vm354, 1, 0
        %v387 = vsel %vm355, 1, 0
        %v388 = vsel %vm356, 1, 0
        %v389 = vsel %vm357, 1, 0
        %v390 = vsel %vm358, 1, 0
        %v391 = vsel %vm359, 1, 0
        %v392 = vsel %vm360, 1, 0
        %v393 = vsel %vm361, 1, 0
        %v394 = vsel %vm362, 1, 0
        %v395 = vsel %vm363, 1, 0
        %v396 = vsel %vm364, 1, 0
        %v397 = vsel %vm365, 1, 0
        %v398 = vsel %vm366, 1, 0
        %v399 = vsel %vm367, 1, 0
        %v400 = vsel %vm368, 1, 0
        %v401 = vsel %vm369, 1, 0
        %v402 = vsel %vm370, 1, 0
        %v403 = vcvt.s32.f32 %v371
        %v404 = vcvt.s32.f32 %v372
        %v405 = vcvt.s32.f32 %v373
        %v406 = vcvt.s32.f32 %v374
        %v407 = vcvt.s32.f32 %v375
        %v408 = vcvt.s32.f32 %v376
        %v409 = vcvt.s32.f32 %v377
        %v410 = vcvt.s32.f32 %v378
        %v411 = vcvt.s32.f32 %v379
        %v412 = vcvt.s32.f32 %v380
        %v413 = vcvt.s32.f32 %v381
        %v414 = vcvt.s32.f32 %v382
        %v415 = vcvt.s32.f32 %v383
        %v416 = vcvt.s32.f32 %v384
        %v417 = vcvt.s32.f32 %v385
        %v418 = vcvt.s32.f32 %v386
        %v419 = vcvt.s32.f32 %v387
        %v420 = vcvt.s32.f32 %v388
        %v421 = vcvt.s32.f32 %v389
        %v422 = vcvt.s32.f32 %v390
        %v423 = vcvt.s32.f32 %v391
        %v424 = vcvt.s32.f32 %v392
        %v425 = vcvt.s32.f32 %v393
        %v426 = vcvt.s32.f32 %v394
        %v427 = vcvt.s32.f32 %v395
        %v428 = vcvt.s32.f32 %v396
        %v429 = vcvt.s32.f32 %v397
        %v430 = vcvt.s32.f32 %v398
        %v431 = vcvt.s32.f32 %v399
        %v432 = vcvt.s32.f32 %v400
        %v433 = vcvt.s32.f32 %v401
        %v434 = vcvt.s32.f32 %v402
        %v435 = vld [vmem:[#allocation2] sm:$0xff]
        %v436 = vld [vmem:[#allocation2 + $0x8] sm:$0xff]
        %v437 = vld [vmem:[#allocation2 + $0x10] sm:$0xff]
        %v438 = vld [vmem:[#allocation2 + $0x18] sm:$0xff]
        %v439 = vld [vmem:[#allocation2 + $0x20] sm:$0xff]
        %v440 = vld [vmem:[#allocation2 + $0x28] sm:$0xff]
        %v441 = vld [vmem:[#allocation2 + $0x30] sm:$0xff]
        %v442 = vld [vmem:[#allocation2 + $0x38] sm:$0xff]
        %v443 = vld [vmem:[#allocation2 + $0x40] sm:$0xff]
        %v444 = vld [vmem:[#allocation2 + $0x48] sm:$0xff]
        %v445 = vld [vmem:[#allocation2 + $0x50] sm:$0xff]
        %v446 = vld [vmem:[#allocation2 + $0x58] sm:$0xff]
        %v447 = vld [vmem:[#allocation2 + $0x60] sm:$0xff]
        %v448 = vld [vmem:[#allocation2 + $0x68] sm:$0xff]
        %v449 = vld [vmem:[#allocation2 + $0x70] sm:$0xff]
        %v450 = vld [vmem:[#allocation2 + $0x78] sm:$0xff]
        %vm451 = vcmask 523264
        %v453 = vsel %vm451, %v403, 0
        %v456 = vsel %vm451, %v404, 0
        %v459 = vsel %vm451, %v405, 0
        %v462 = vsel %vm451, %v406, 0
        %v465 = vsel %vm451, %v407, 0
        %v468 = vsel %vm451, %v408, 0
        %v471 = vsel %vm451, %v409, 0
        %v474 = vsel %vm451, %v410, 0
        %v477 = vsel %vm451, %v411, 0
        %v480 = vsel %vm451, %v412, 0
        %v483 = vsel %vm451, %v413, 0
        %v486 = vsel %vm451, %v414, 0
        %v489 = vsel %vm451, %v415, 0
        %v492 = vsel %vm451, %v416, 0
        %v495 = vsel %vm451, %v417, 0
        %v498 = vsel %vm451, %v418, 0
        %v501 = vsel %vm451, %v419, 0
        %v504 = vsel %vm451, %v420, 0
        %v507 = vsel %vm451, %v421, 0
        %v510 = vsel %vm451, %v422, 0
        %v513 = vsel %vm451, %v423, 0
        %v516 = vsel %vm451, %v424, 0
        %v519 = vsel %vm451, %v425, 0
        %v522 = vsel %vm451, %v426, 0
        %v525 = vsel %vm451, %v427, 0
        %v528 = vsel %vm451, %v428, 0
        %v531 = vsel %vm451, %v429, 0
        %v534 = vsel %vm451, %v430, 0
        %v537 = vsel %vm451, %v431, 0
        %v540 = vsel %vm451, %v432, 0
        %v543 = vsel %vm451, %v433, 0
        %v546 = vsel %vm451, %v434, 0
        %548 = vmatprep.subr.mxu0 %v436
        %549 = vmatpush1.msra.mxu0 %v435
        %550 = vmatprep.subr.mxu0 %v438
        %551 = vmatpush1.msra.mxu0 %v437
        %552 = vmatprep.subr.mxu0 %v440
        %553 = vmatpush1.msra.mxu0 %v439
        %554 = vmatprep.subr.mxu0 %v442
        %555 = vmatpush1.msra.mxu0 %v441
        %556 = vmatprep.subr.mxu0 %v444
        %557 = vmatpush1.msra.mxu0 %v443
        %558 = vmatprep.subr.mxu0 %v446
        %559 = vmatpush1.msra.mxu0 %v445
        %560 = vmatprep.subr.mxu0 %v448
        %561 = vmatpush1.msra.mxu0 %v447
        %562 = vmatprep.subr.mxu0 %v450
        %563 = vmatpush1.msra.mxu0 %v449
        %564 = vmatprep.subr.mxu0 0.0
        %565 = vmatpush1.msra.mxu0 0.0
        %566 = vmatprep.subr.mxu0 0.0
        %567 = vmatpush1.msra.mxu0 0.0
        %568 = vmatprep.subr.mxu0 0.0
        %569 = vmatpush1.msra.mxu0 0.0
        %570 = vmatprep.subr.mxu0 0.0
        %571 = vmatpush1.msra.mxu0 0.0
        %572 = vmatprep.subr.mxu0 0.0
        %573 = vmatpush1.msra.mxu0 0.0
        %574 = vmatprep.subr.mxu0 0.0
        %575 = vmatpush1.msra.mxu0 0.0
        %576 = vmatprep.subr.mxu0 0.0
        %577 = vmatpush1.msra.mxu0 0.0
        %578 = vmatprep.subr.mxu0 0.0
        %579 = vmatpush1.msra.mxu0 0.0
        %580 = vmatprep.subr.mxu0 0.0
        %581 = vmatpush1.msra.mxu0 0.0
        %582 = vmatprep.subr.mxu0 0.0
        %583 = vmatpush1.msra.mxu0 0.0
        %584 = vmatprep.subr.mxu0 0.0
        %585 = vmatpush1.msra.mxu0 0.0
        %586 = vmatprep.subr.mxu0 0.0
        %587 = vmatpush1.msra.mxu0 0.0
        %588 = vmatprep.subr.mxu0 0.0
        %589 = vmatpush1.msra.mxu0 0.0
        %590 = vmatprep.subr.mxu0 0.0
        %591 = vmatpush1.msra.mxu0 0.0
        %592 = vmatprep.subr.mxu0 0.0
        %593 = vmatpush1.msra.mxu0 0.0
        %594 = vmatprep.subr.mxu0 0.0
        %595 = vmatpush1.msra.mxu0 0.0
        %596 = vmatprep.subr.mxu0 0.0
        %597 = vmatpush1.msra.mxu0 0.0
        %598 = vmatprep.subr.mxu0 0.0
        %599 = vmatpush1.msra.mxu0 0.0
        %600 = vmatprep.subr.mxu0 0.0
        %601 = vmatpush1.msra.mxu0 0.0
        %602 = vmatprep.subr.mxu0 0.0
        %603 = vmatpush1.msra.mxu0 0.0
        %604 = vmatprep.subr.mxu0 0.0
        %605 = vmatpush1.msra.mxu0 0.0
        %606 = vmatprep.subr.mxu0 0.0
        %607 = vmatpush1.msra.mxu0 0.0
        %608 = vmatprep.subr.mxu0 0.0
        %609 = vmatpush1.msra.mxu0 0.0
        %610 = vmatprep.subr.mxu0 0.0
        %611 = vmatpush1.msra.mxu0 0.0
        %612 = vmatprep.mubr.f32.mxu0 0.0
        %613 = vmatmul.mubr.f32.gmra.mrb[0].mxu0 %v453
        %v614 = vpop.f32.mrb[0].mxu0
        %v615 = vadd.f32 0.0, %v614
        %v616 = vpop.f32.mrb[0].mxu0
        %v617 = vadd.f32 0.0, %v616
        %618 = vmatprep.mubr.f32.mxu0 0.0
        %619 = vmatmul.mubr.f32.gmra.mrb[0].mxu0 %v456
        %v620 = vpop.f32.mrb[0].mxu0
        %v621 = vadd.f32 0.0, %v620
        %v622 = vpop.f32.mrb[0].mxu0
        %v623 = vadd.f32 0.0, %v622
        %624 = vmatprep.mubr.f32.mxu0 0.0
        %625 = vmatmul.mubr.f32.gmra.mrb[0].mxu0 %v459
        %v626 = vpop.f32.mrb[0].mxu0
        %v627 = vadd.f32 0.0, %v626
        %v628 = vpop.f32.mrb[0].mxu0
        %v629 = vadd.f32 0.0, %v628
        %630 = vmatprep.mubr.f32.mxu0 0.0
        %631 = vmatmul.mubr.f32.gmra.mrb[0].mxu0 %v462
        %v632 = vpop.f32.mrb[0].mxu0
        %v633 = vadd.f32 0.0, %v632
        %v634 = vpop.f32.mrb[0].mxu0
        %v635 = vadd.f32 0.0, %v634
        %636 = vmatprep.mubr.f32.mxu0 0.0
        %637 = vmatmul.mubr.f32.gmra.mrb[0].mxu0 %v465
        %v638 = vpop.f32.mrb[0].mxu0
        %v639 = vadd.f32 0.0, %v638
        %v640 = vpop.f32.mrb[0].mxu0
        %v641 = vadd.f32 0.0, %v640
        %642 = vmatprep.mubr.f32.mxu0 0.0
        %643 = vmatmul.mubr.f32.gmra.mrb[0].mxu0 %v468
        %v644 = vpop.f32.mrb[0].mxu0
        %v645 = vadd.f32 0.0, %v644
        %v646 = vpop.f32.mrb[0].mxu0
        %v647 = vadd.f32 0.0, %v646
        %648 = vmatprep.mubr.f32.mxu0 0.0
        %649 = vmatmul.mubr.f32.gmra.mrb[0].mxu0 %v471
        %v650 = vpop.f32.mrb[0].mxu0
        %v651 = vadd.f32 0.0, %v650
        %v652 = vpop.f32.mrb[0].mxu0
        %v653 = vadd.f32 0.0, %v652
        %654 = vmatprep.mubr.f32.mxu0 0.0
        %655 = vmatmul.mubr.f32.gmra.mrb[0].mxu0 %v474
        %v656 = vpop.f32.mrb[0].mxu0
        %v657 = vadd.f32 0.0, %v656
        %v658 = vpop.f32.mrb[0].mxu0
        %v659 = vadd.f32 0.0, %v658
        %660 = vmatprep.mubr.f32.mxu0 0.0
        %661 = vmatmul.mubr.f32.gmra.mrb[0].mxu0 %v477
        %v662 = vpop.f32.mrb[0].mxu0
        %v663 = vadd.f32 0.0, %v662
        %v664 = vpop.f32.mrb[0].mxu0
        %v665 = vadd.f32 0.0, %v664
        %666 = vmatprep.mubr.f32.mxu0 0.0
        %667 = vmatmul.mubr.f32.gmra.mrb[0].mxu0 %v480
        %v668 = vpop.f32.mrb[0].mxu0
        %v669 = vadd.f32 0.0, %v668
        %v670 = vpop.f32.mrb[0].mxu0
        %v671 = vadd.f32 0.0, %v670
        %672 = vmatprep.mubr.f32.mxu0 0.0
        %673 = vmatmul.mubr.f32.gmra.mrb[0].mxu0 %v483
        %v674 = vpop.f32.mrb[0].mxu0
        %v675 = vadd.f32 0.0, %v674
        %v676 = vpop.f32.mrb[0].mxu0
        %v677 = vadd.f32 0.0, %v676
        %678 = vmatprep.mubr.f32.mxu0 0.0
        %679 = vmatmul.mubr.f32.gmra.mrb[0].mxu0 %v486
        %v680 = vpop.f32.mrb[0].mxu0
        %v681 = vadd.f32 0.0, %v680
        %v682 = vpop.f32.mrb[0].mxu0
        %v683 = vadd.f32 0.0, %v682
        %684 = vmatprep.mubr.f32.mxu0 0.0
        %685 = vmatmul.mubr.f32.gmra.mrb[0].mxu0 %v489
        %v686 = vpop.f32.mrb[0].mxu0
        %v687 = vadd.f32 0.0, %v686
        %v688 = vpop.f32.mrb[0].mxu0
        %v689 = vadd.f32 0.0, %v688
        %690 = vmatprep.mubr.f32.mxu0 0.0
        %691 = vmatmul.mubr.f32.gmra.mrb[0].mxu0 %v492
        %v692 = vpop.f32.mrb[0].mxu0
        %v693 = vadd.f32 0.0, %v692
        %v694 = vpop.f32.mrb[0].mxu0
        %v695 = vadd.f32 0.0, %v694
        %696 = vmatprep.mubr.f32.mxu0 0.0
        %697 = vmatmul.mubr.f32.gmra.mrb[0].mxu0 %v495
        %v698 = vpop.f32.mrb[0].mxu0
        %v699 = vadd.f32 0.0, %v698
        %v700 = vpop.f32.mrb[0].mxu0
        %v701 = vadd.f32 0.0, %v700
        %702 = vmatprep.mubr.f32.mxu0 0.0
        %703 = vmatmul.mubr.f32.gmra.mrb[0].mxu0 %v498
        %v704 = vpop.f32.mrb[0].mxu0
        %v705 = vadd.f32 0.0, %v704
        %v706 = vpop.f32.mrb[0].mxu0
        %v707 = vadd.f32 0.0, %v706
        %708 = vmatprep.mubr.f32.mxu0 0.0
        %709 = vmatmul.mubr.f32.gmra.mrb[0].mxu0 %v501
        %v710 = vpop.f32.mrb[0].mxu0
        %v711 = vadd.f32 0.0, %v710
        %v712 = vpop.f32.mrb[0].mxu0
        %v713 = vadd.f32 0.0, %v712
        %714 = vmatprep.mubr.f32.mxu0 0.0
        %715 = vmatmul.mubr.f32.gmra.mrb[0].mxu0 %v504
        %v716 = vpop.f32.mrb[0].mxu0
        %v717 = vadd.f32 0.0, %v716
        %v718 = vpop.f32.mrb[0].mxu0
        %v719 = vadd.f32 0.0, %v718
        %720 = vmatprep.mubr.f32.mxu0 0.0
        %721 = vmatmul.mubr.f32.gmra.mrb[0].mxu0 %v507
        %v722 = vpop.f32.mrb[0].mxu0
        %v723 = vadd.f32 0.0, %v722
        %v724 = vpop.f32.mrb[0].mxu0
        %v725 = vadd.f32 0.0, %v724
        %726 = vmatprep.mubr.f32.mxu0 0.0
        %727 = vmatmul.mubr.f32.gmra.mrb[0].mxu0 %v510
        %v728 = vpop.f32.mrb[0].mxu0
        %v729 = vadd.f32 0.0, %v728
        %v730 = vpop.f32.mrb[0].mxu0
        %v731 = vadd.f32 0.0, %v730
        %732 = vmatprep.mubr.f32.mxu0 0.0
        %733 = vmatmul.mubr.f32.gmra.mrb[0].mxu0 %v513
        %v734 = vpop.f32.mrb[0].mxu0
        %v735 = vadd.f32 0.0, %v734
        %v736 = vpop.f32.mrb[0].mxu0
        %v737 = vadd.f32 0.0, %v736
        %738 = vmatprep.mubr.f32.mxu0 0.0
        %739 = vmatmul.mubr.f32.gmra.mrb[0].mxu0 %v516
        %v740 = vpop.f32.mrb[0].mxu0
        %v741 = vadd.f32 0.0, %v740
        %v742 = vpop.f32.mrb[0].mxu0
        %v743 = vadd.f32 0.0, %v742
        %744 = vmatprep.mubr.f32.mxu0 0.0
        %745 = vmatmul.mubr.f32.gmra.mrb[0].mxu0 %v519
        %v746 = vpop.f32.mrb[0].mxu0
        %v747 = vadd.f32 0.0, %v746
        %v748 = vpop.f32.mrb[0].mxu0
        %v749 = vadd.f32 0.0, %v748
        %750 = vmatprep.mubr.f32.mxu0 0.0
        %751 = vmatmul.mubr.f32.gmra.mrb[0].mxu0 %v522
        %v752 = vpop.f32.mrb[0].mxu0
        %v753 = vadd.f32 0.0, %v752
        %v754 = vpop.f32.mrb[0].mxu0
        %v755 = vadd.f32 0.0, %v754
        %756 = vmatprep.mubr.f32.mxu0 0.0
        %757 = vmatmul.mubr.f32.gmra.mrb[0].mxu0 %v525
        %v758 = vpop.f32.mrb[0].mxu0
        %v759 = vadd.f32 0.0, %v758
        %v760 = vpop.f32.mrb[0].mxu0
        %v761 = vadd.f32 0.0, %v760
        %762 = vmatprep.mubr.f32.mxu0 0.0
        %763 = vmatmul.mubr.f32.gmra.mrb[0].mxu0 %v528
        %v764 = vpop.f32.mrb[0].mxu0
        %v765 = vadd.f32 0.0, %v764
        %v766 = vpop.f32.mrb[0].mxu0
        %v767 = vadd.f32 0.0, %v766
        %768 = vmatprep.mubr.f32.mxu0 0.0
        %769 = vmatmul.mubr.f32.gmra.mrb[0].mxu0 %v531
        %v770 = vpop.f32.mrb[0].mxu0
        %v771 = vadd.f32 0.0, %v770
        %v772 = vpop.f32.mrb[0].mxu0
        %v773 = vadd.f32 0.0, %v772
        %774 = vmatprep.mubr.f32.mxu0 0.0
        %775 = vmatmul.mubr.f32.gmra.mrb[0].mxu0 %v534
        %v776 = vpop.f32.mrb[0].mxu0
        %v777 = vadd.f32 0.0, %v776
        %v778 = vpop.f32.mrb[0].mxu0
        %v779 = vadd.f32 0.0, %v778
        %780 = vmatprep.mubr.f32.mxu0 0.0
        %781 = vmatmul.mubr.f32.gmra.mrb[0].mxu0 %v537
        %v782 = vpop.f32.mrb[0].mxu0
        %v783 = vadd.f32 0.0, %v782
        %v784 = vpop.f32.mrb[0].mxu0
        %v785 = vadd.f32 0.0, %v784
        %786 = vmatprep.mubr.f32.mxu0 0.0
        %787 = vmatmul.mubr.f32.gmra.mrb[0].mxu0 %v540
        %v788 = vpop.f32.mrb[0].mxu0
        %v789 = vadd.f32 0.0, %v788
        %v790 = vpop.f32.mrb[0].mxu0
        %v791 = vadd.f32 0.0, %v790
        %792 = vmatprep.mubr.f32.mxu0 0.0
        %793 = vmatmul.mubr.f32.gmra.mrb[0].mxu0 %v543
        %v794 = vpop.f32.mrb[0].mxu0
        %v795 = vadd.f32 0.0, %v794
        %v796 = vpop.f32.mrb[0].mxu0
        %v797 = vadd.f32 0.0, %v796
        %798 = vmatprep.mubr.f32.mxu0 0.0
        %799 = vmatmul.mubr.f32.gmra.mrb[0].mxu0 %v546
        %v800 = vpop.f32.mrb[0].mxu0
        %v801 = vadd.f32 0.0, %v800
        %v802 = vpop.f32.mrb[0].mxu0
        %v803 = vadd.f32 0.0, %v802
        %804 = vdwg.mxu0
        %v805 = vxor.u32 %v615, 2147483648
        %v806 = vxor.u32 %v621, 2147483648
        %v807 = vxor.u32 %v627, 2147483648
        %v808 = vxor.u32 %v633, 2147483648
        %v809 = vxor.u32 %v639, 2147483648
        %v810 = vxor.u32 %v645, 2147483648
        %v811 = vxor.u32 %v651, 2147483648
        %v812 = vxor.u32 %v657, 2147483648
        %v813 = vxor.u32 %v663, 2147483648
        %v814 = vxor.u32 %v669, 2147483648
        %v815 = vxor.u32 %v675, 2147483648
        %v816 = vxor.u32 %v681, 2147483648
        %v817 = vxor.u32 %v687, 2147483648
        %v818 = vxor.u32 %v693, 2147483648
        %v819 = vxor.u32 %v699, 2147483648
        %v820 = vxor.u32 %v705, 2147483648
        %v821 = vxor.u32 %v711, 2147483648
        %v822 = vxor.u32 %v717, 2147483648
        %v823 = vxor.u32 %v723, 2147483648
        %v824 = vxor.u32 %v729, 2147483648
        %v825 = vxor.u32 %v735, 2147483648
        %v826 = vxor.u32 %v741, 2147483648
        %v827 = vxor.u32 %v747, 2147483648
        %v828 = vxor.u32 %v753, 2147483648
        %v829 = vxor.u32 %v759, 2147483648
        %v830 = vxor.u32 %v765, 2147483648
        %v831 = vxor.u32 %v771, 2147483648
        %v832 = vxor.u32 %v777, 2147483648
        %v833 = vxor.u32 %v783, 2147483648
        %v834 = vxor.u32 %v789, 2147483648
        %v835 = vxor.u32 %v795, 2147483648
        %v836 = vxor.u32 %v801, 2147483648
        %v837 = vmul.f32 %v805, 1.442695
        %v838 = vpow.pop %v837
        %v839 = vmul.f32 %v806, 1.442695
        %v840 = vpow.pop %v839
        %v841 = vmul.f32 %v807, 1.442695
        %v842 = vpow.pop %v841
        %v843 = vmul.f32 %v808, 1.442695
        %v844 = vpow.pop %v843
        %v845 = vmul.f32 %v809, 1.442695
        %v846 = vpow.pop %v845
        %v847 = vmul.f32 %v810, 1.442695
        %v848 = vpow.pop %v847
        %v849 = vmul.f32 %v811, 1.442695
        %v850 = vpow.pop %v849
        %v851 = vmul.f32 %v812, 1.442695
        %v852 = vpow.pop %v851
        %v853 = vmul.f32 %v813, 1.442695
        %v854 = vpow.pop %v853
        %v855 = vmul.f32 %v814, 1.442695
        %v856 = vpow.pop %v855
        %v857 = vmul.f32 %v815, 1.442695
        %v858 = vpow.pop %v857
        %v859 = vmul.f32 %v816, 1.442695
        %v860 = vpow.pop %v859
        %v861 = vmul.f32 %v817, 1.442695
        %v862 = vpow.pop %v861
        %v863 = vmul.f32 %v818, 1.442695
        %v864 = vpow.pop %v863
        %v865 = vmul.f32 %v819, 1.442695
        %v866 = vpow.pop %v865
        %v867 = vmul.f32 %v820, 1.442695
        %v868 = vpow.pop %v867
        %v869 = vmul.f32 %v821, 1.442695
        %v870 = vpow.pop %v869
        %v871 = vmul.f32 %v822, 1.442695
        %v872 = vpow.pop %v871
        %v873 = vmul.f32 %v823, 1.442695
        %v874 = vpow.pop %v873
        %v875 = vmul.f32 %v824, 1.442695
        %v876 = vpow.pop %v875
        %v877 = vmul.f32 %v825, 1.442695
        %v878 = vpow.pop %v877
        %v879 = vmul.f32 %v826, 1.442695
        %v880 = vpow.pop %v879
        %v881 = vmul.f32 %v827, 1.442695
        %v882 = vpow.pop %v881
        %v883 = vmul.f32 %v828, 1.442695
        %v884 = vpow.pop %v883
        %v885 = vmul.f32 %v829, 1.442695
        %v886 = vpow.pop %v885
        %v887 = vmul.f32 %v830, 1.442695
        %v888 = vpow.pop %v887
        %v889 = vmul.f32 %v831, 1.442695
        %v890 = vpow.pop %v889
        %v891 = vmul.f32 %v832, 1.442695
        %v892 = vpow.pop %v891
        %v893 = vmul.f32 %v833, 1.442695
        %v894 = vpow.pop %v893
        %v895 = vmul.f32 %v834, 1.442695
        %v896 = vpow.pop %v895
        %v897 = vmul.f32 %v835, 1.442695
        %v898 = vpow.pop %v897
        %v899 = vmul.f32 %v836, 1.442695
        %v900 = vpow.pop %v899
        %v901 = vadd.f32 %v838, 1.0
        %v902 = vadd.f32 %v840, 1.0
        %v903 = vadd.f32 %v842, 1.0
        %v904 = vadd.f32 %v844, 1.0
        %v905 = vadd.f32 %v846, 1.0
        %v906 = vadd.f32 %v848, 1.0
        %v907 = vadd.f32 %v850, 1.0
        %v908 = vadd.f32 %v852, 1.0
        %v909 = vadd.f32 %v854, 1.0
        %v910 = vadd.f32 %v856, 1.0
        %v911 = vadd.f32 %v858, 1.0
        %v912 = vadd.f32 %v860, 1.0
        %v913 = vadd.f32 %v862, 1.0
        %v914 = vadd.f32 %v864, 1.0
        %v915 = vadd.f32 %v866, 1.0
        %v916 = vadd.f32 %v868, 1.0
        %v917 = vadd.f32 %v870, 1.0
        %v918 = vadd.f32 %v872, 1.0
        %v919 = vadd.f32 %v874, 1.0
        %v920 = vadd.f32 %v876, 1.0
        %v921 = vadd.f32 %v878, 1.0
        %v922 = vadd.f32 %v880, 1.0
        %v923 = vadd.f32 %v882, 1.0
        %v924 = vadd.f32 %v884, 1.0
        %v925 = vadd.f32 %v886, 1.0
        %v926 = vadd.f32 %v888, 1.0
        %v927 = vadd.f32 %v890, 1.0
        %v928 = vadd.f32 %v892, 1.0
        %v929 = vadd.f32 %v894, 1.0
        %v930 = vadd.f32 %v896, 1.0
        %v931 = vadd.f32 %v898, 1.0
        %v932 = vadd.f32 %v900, 1.0
        %v933 = vrcp.pop %v901
        %v934 = vmul.f32 1.0, %v933
        %v935 = vrcp.pop %v902
        %v936 = vmul.f32 1.0, %v935
        %v937 = vrcp.pop %v903
        %v938 = vmul.f32 1.0, %v937
        %v939 = vrcp.pop %v904
        %v940 = vmul.f32 1.0, %v939
        %v941 = vrcp.pop %v905
        %v942 = vmul.f32 1.0, %v941
        %v943 = vrcp.pop %v906
        %v944 = vmul.f32 1.0, %v943
        %v945 = vrcp.pop %v907
        %v946 = vmul.f32 1.0, %v945
        %v947 = vrcp.pop %v908
        %v948 = vmul.f32 1.0, %v947
        %v949 = vrcp.pop %v909
        %v950 = vmul.f32 1.0, %v949
        %v951 = vrcp.pop %v910
        %v952 = vmul.f32 1.0, %v951
        %v953 = vrcp.pop %v911
        %v954 = vmul.f32 1.0, %v953
        %v955 = vrcp.pop %v912
        %v956 = vmul.f32 1.0, %v955
        %v957 = vrcp.pop %v913
        %v958 = vmul.f32 1.0, %v957
        %v959 = vrcp.pop %v914
        %v960 = vmul.f32 1.0, %v959
        %v961 = vrcp.pop %v915
        %v962 = vmul.f32 1.0, %v961
        %v963 = vrcp.pop %v916
        %v964 = vmul.f32 1.0, %v963
        %v965 = vrcp.pop %v917
        %v966 = vmul.f32 1.0, %v965
        %v967 = vrcp.pop %v918
        %v968 = vmul.f32 1.0, %v967
        %v969 = vrcp.pop %v919
        %v970 = vmul.f32 1.0, %v969
        %v971 = vrcp.pop %v920
        %v972 = vmul.f32 1.0, %v971
        %v973 = vrcp.pop %v921
        %v974 = vmul.f32 1.0, %v973
        %v975 = vrcp.pop %v922
        %v976 = vmul.f32 1.0, %v975
        %v977 = vrcp.pop %v923
        %v978 = vmul.f32 1.0, %v977
        %v979 = vrcp.pop %v924
        %v980 = vmul.f32 1.0, %v979
        %v981 = vrcp.pop %v925
        %v982 = vmul.f32 1.0, %v981
        %v983 = vrcp.pop %v926
        %v984 = vmul.f32 1.0, %v983
        %v985 = vrcp.pop %v927
        %v986 = vmul.f32 1.0, %v985
        %v987 = vrcp.pop %v928
        %v988 = vmul.f32 1.0, %v987
        %v989 = vrcp.pop %v929
        %v990 = vmul.f32 1.0, %v989
        %v991 = vrcp.pop %v930
        %v992 = vmul.f32 1.0, %v991
        %v993 = vrcp.pop %v931
        %v994 = vmul.f32 1.0, %v993
        %v995 = vrcp.pop %v932
        %v996 = vmul.f32 1.0, %v995
        %v997 = vld [vmem:[%s206] sm:$0xff]
        %v998 = vld [vmem:[%s206 + $0x8] sm:$0xff]
        %v999 = vld [vmem:[%s206 + $0x10] sm:$0xff]
        %v1000 = vld [vmem:[%s206 + $0x18] sm:$0xff]
        %v1001 = vld [vmem:[%s206 + $0x20] sm:$0xff]
        %v1002 = vld [vmem:[%s206 + $0x28] sm:$0xff]
        %v1003 = vld [vmem:[%s206 + $0x30] sm:$0xff]
        %v1004 = vld [vmem:[%s206 + $0x38] sm:$0xff]
        %v1005 = vld [vmem:[%s206 + $0x40] sm:$0xff]
        %v1006 = vld [vmem:[%s206 + $0x48] sm:$0xff]
        %v1007 = vld [vmem:[%s206 + $0x50] sm:$0xff]
        %v1008 = vld [vmem:[%s206 + $0x58] sm:$0xff]
        %v1009 = vld [vmem:[%s206 + $0x60] sm:$0xff]
        %v1010 = vld [vmem:[%s206 + $0x68] sm:$0xff]
        %v1011 = vld [vmem:[%s206 + $0x70] sm:$0xff]
        %v1012 = vld [vmem:[%s206 + $0x78] sm:$0xff]
        %v1013 = vld [vmem:[%s206 + $0x80] sm:$0xff]
        %v1014 = vld [vmem:[%s206 + $0x88] sm:$0xff]
        %v1015 = vld [vmem:[%s206 + $0x90] sm:$0xff]
        %v1016 = vld [vmem:[%s206 + $0x98] sm:$0xff]
        %v1017 = vld [vmem:[%s206 + $0xa0] sm:$0xff]
        %v1018 = vld [vmem:[%s206 + $0xa8] sm:$0xff]
        %v1019 = vld [vmem:[%s206 + $0xb0] sm:$0xff]
        %v1020 = vld [vmem:[%s206 + $0xb8] sm:$0xff]
        %v1021 = vld [vmem:[%s206 + $0xc0] sm:$0xff]
        %v1022 = vld [vmem:[%s206 + $0xc8] sm:$0xff]
        %v1023 = vld [vmem:[%s206 + $0xd0] sm:$0xff]
        %v1024 = vld [vmem:[%s206 + $0xd8] sm:$0xff]
        %v1025 = vld [vmem:[%s206 + $0xe0] sm:$0xff]
        %v1026 = vld [vmem:[%s206 + $0xe8] sm:$0xff]
        %v1027 = vld [vmem:[%s206 + $0xf0] sm:$0xff]
        %v1028 = vld [vmem:[%s206 + $0xf8] sm:$0xff]
        %v1029 = vsub.f32 %v997, %v617
        %v1030 = vsub.f32 %v998, %v623
        %v1031 = vsub.f32 %v999, %v629
        %v1032 = vsub.f32 %v1000, %v635
        %v1033 = vsub.f32 %v1001, %v641
        %v1034 = vsub.f32 %v1002, %v647
        %v1035 = vsub.f32 %v1003, %v653
        %v1036 = vsub.f32 %v1004, %v659
        %v1037 = vsub.f32 %v1005, %v665
        %v1038 = vsub.f32 %v1006, %v671
        %v1039 = vsub.f32 %v1007, %v677
        %v1040 = vsub.f32 %v1008, %v683
        %v1041 = vsub.f32 %v1009, %v689
        %v1042 = vsub.f32 %v1010, %v695
        %v1043 = vsub.f32 %v1011, %v701
        %v1044 = vsub.f32 %v1012, %v707
        %v1045 = vsub.f32 %v1013, %v713
        %v1046 = vsub.f32 %v1014, %v719
        %v1047 = vsub.f32 %v1015, %v725
        %v1048 = vsub.f32 %v1016, %v731
        %v1049 = vsub.f32 %v1017, %v737
        %v1050 = vsub.f32 %v1018, %v743
        %v1051 = vsub.f32 %v1019, %v749
        %v1052 = vsub.f32 %v1020, %v755
        %v1053 = vsub.f32 %v1021, %v761
        %v1054 = vsub.f32 %v1022, %v767
        %v1055 = vsub.f32 %v1023, %v773
        %v1056 = vsub.f32 %v1024, %v779
        %v1057 = vsub.f32 %v1025, %v785
        %v1058 = vsub.f32 %v1026, %v791
        %v1059 = vsub.f32 %v1027, %v797
        %v1060 = vsub.f32 %v1028, %v803
        %v1061 = vmul.f32 %v934, %v1029
        %v1062 = vmul.f32 %v936, %v1030
        %v1063 = vmul.f32 %v938, %v1031
        %v1064 = vmul.f32 %v940, %v1032
        %v1065 = vmul.f32 %v942, %v1033
        %v1066 = vmul.f32 %v944, %v1034
        %v1067 = vmul.f32 %v946, %v1035
        %v1068 = vmul.f32 %v948, %v1036
        %v1069 = vmul.f32 %v950, %v1037
        %v1070 = vmul.f32 %v952, %v1038
        %v1071 = vmul.f32 %v954, %v1039
        %v1072 = vmul.f32 %v956, %v1040
        %v1073 = vmul.f32 %v958, %v1041
        %v1074 = vmul.f32 %v960, %v1042
        %v1075 = vmul.f32 %v962, %v1043
        %v1076 = vmul.f32 %v964, %v1044
        %v1077 = vmul.f32 %v966, %v1045
        %v1078 = vmul.f32 %v968, %v1046
        %v1079 = vmul.f32 %v970, %v1047
        %v1080 = vmul.f32 %v972, %v1048
        %v1081 = vmul.f32 %v974, %v1049
        %v1082 = vmul.f32 %v976, %v1050
        %v1083 = vmul.f32 %v978, %v1051
        %v1084 = vmul.f32 %v980, %v1052
        %v1085 = vmul.f32 %v982, %v1053
        %v1086 = vmul.f32 %v984, %v1054
        %v1087 = vmul.f32 %v986, %v1055
        %v1088 = vmul.f32 %v988, %v1056
        %v1089 = vmul.f32 %v990, %v1057
        %v1090 = vmul.f32 %v992, %v1058
        %v1091 = vmul.f32 %v994, %v1059
        %v1092 = vmul.f32 %v996, %v1060
        %v1093 = vadd.f32 %v617, %v1061
        %v1094 = vadd.f32 %v623, %v1062
        %v1095 = vadd.f32 %v629, %v1063
        %v1096 = vadd.f32 %v635, %v1064
        %v1097 = vadd.f32 %v641, %v1065
        %v1098 = vadd.f32 %v647, %v1066
        %v1099 = vadd.f32 %v653, %v1067
        %v1100 = vadd.f32 %v659, %v1068
        %v1101 = vadd.f32 %v665, %v1069
        %v1102 = vadd.f32 %v671, %v1070
        %v1103 = vadd.f32 %v677, %v1071
        %v1104 = vadd.f32 %v683, %v1072
        %v1105 = vadd.f32 %v689, %v1073
        %v1106 = vadd.f32 %v695, %v1074
        %v1107 = vadd.f32 %v701, %v1075
        %v1108 = vadd.f32 %v707, %v1076
        %v1109 = vadd.f32 %v713, %v1077
        %v1110 = vadd.f32 %v719, %v1078
        %v1111 = vadd.f32 %v725, %v1079
        %v1112 = vadd.f32 %v731, %v1080
        %v1113 = vadd.f32 %v737, %v1081
        %v1114 = vadd.f32 %v743, %v1082
        %v1115 = vadd.f32 %v749, %v1083
        %v1116 = vadd.f32 %v755, %v1084
        %v1117 = vadd.f32 %v761, %v1085
        %v1118 = vadd.f32 %v767, %v1086
        %v1119 = vadd.f32 %v773, %v1087
        %v1120 = vadd.f32 %v779, %v1088
        %v1121 = vadd.f32 %v785, %v1089
        %v1122 = vadd.f32 %v791, %v1090
        %v1123 = vadd.f32 %v797, %v1091
        %v1124 = vadd.f32 %v803, %v1092
        %1125 = vst [vmem:[%s195] sm:$0xff] %v1093
        %1126 = vst [vmem:[%s195 + $0x8] sm:$0xff] %v1094
        %1127 = vst [vmem:[%s195 + $0x10] sm:$0xff] %v1095
        %1128 = vst [vmem:[%s195 + $0x18] sm:$0xff] %v1096
        %1129 = vst [vmem:[%s195 + $0x20] sm:$0xff] %v1097
        %1130 = vst [vmem:[%s195 + $0x28] sm:$0xff] %v1098
        %1131 = vst [vmem:[%s195 + $0x30] sm:$0xff] %v1099
        %1132 = vst [vmem:[%s195 + $0x38] sm:$0xff] %v1100
        %1133 = vst [vmem:[%s195 + $0x40] sm:$0xff] %v1101
        %1134 = vst [vmem:[%s195 + $0x48] sm:$0xff] %v1102
        %1135 = vst [vmem:[%s195 + $0x50] sm:$0xff] %v1103
        %1136 = vst [vmem:[%s195 + $0x58] sm:$0xff] %v1104
        %1137 = vst [vmem:[%s195 + $0x60] sm:$0xff] %v1105
        %1138 = vst [vmem:[%s195 + $0x68] sm:$0xff] %v1106
        %1139 = vst [vmem:[%s195 + $0x70] sm:$0xff] %v1107
        %1140 = vst [vmem:[%s195 + $0x78] sm:$0xff] %v1108
        %1141 = vst [vmem:[%s195 + $0x80] sm:$0xff] %v1109
        %1142 = vst [vmem:[%s195 + $0x88] sm:$0xff] %v1110
        %1143 = vst [vmem:[%s195 + $0x90] sm:$0xff] %v1111
        %1144 = vst [vmem:[%s195 + $0x98] sm:$0xff] %v1112
        %1145 = vst [vmem:[%s195 + $0xa0] sm:$0xff] %v1113
        %1146 = vst [vmem:[%s195 + $0xa8] sm:$0xff] %v1114
        %1147 = vst [vmem:[%s195 + $0xb0] sm:$0xff] %v1115
        %1148 = vst [vmem:[%s195 + $0xb8] sm:$0xff] %v1116
        %1149 = vst [vmem:[%s195 + $0xc0] sm:$0xff] %v1117
        %1150 = vst [vmem:[%s195 + $0xc8] sm:$0xff] %v1118
        %1151 = vst [vmem:[%s195 + $0xd0] sm:$0xff] %v1119
        %1152 = vst [vmem:[%s195 + $0xd8] sm:$0xff] %v1120
        %1153 = vst [vmem:[%s195 + $0xe0] sm:$0xff] %v1121
        %1154 = vst [vmem:[%s195 + $0xe8] sm:$0xff] %v1122
        %1155 = vst [vmem:[%s195 + $0xf0] sm:$0xff] %v1123
        %1156 = vst [vmem:[%s195 + $0xf8] sm:$0xff] %v1124
        %s1157 = sand.u32 %s99, 1
        %s1158 = scalar_lea.sflag [#allocation4], %s1157
        %s1159 = sand.u32 %s99, 1
        %s1160 = smul.addr %s1159, 256
        %s1161 = scalar_lea.vmem [#allocation5], %s1160
        // Predicated region
        $region37: #{tpu_custom_call.1} parent=31 // pred_check
          %p1162 = pneg %p109
        $region38: #{tpu_custom_call.1} parent=31 // pred_check_branch
          %1164 = sbr.rel (%p1162) target = $region40
        $region39: #{tpu_custom_call.1} parent=31 // pred_region
          %s1165 = smul.u32 32, %s18
          %s1167 = ssub.s32 4096, 4096
          %1168 = vsyncadd %s1158, %s1167
          %s1169 = smul.addr %s1165, 128
          %s1170 = scalar_lea.hbm %s3, %s1169
          %s1171 = sshll.u32 %s1161, 4
          %s1172 = int_to_ptr.vmem [resolvable:$true] %s1171
          %1177 = dma.vmem_to_hbm [thread:$0]  %s1172, 4096, %s1170, %s1158, 128, 128, 8
        $region40: #{tpu_custom_call.1} parent=31 // pred_fallthru
          _
      $region32: #{tpu_custom_call.1} parent=5 // pred_fallthru
        _
      %p1178 = scmp.le.s32.totalorder 2, %s13
      // Predicated region
      $region41: #{tpu_custom_call.1} parent=5 // pred_check
        %p1179 = pneg %p1178
      $region42: #{tpu_custom_call.1} parent=5 // pred_check_branch
        %1181 = sbr.rel (%p1179) target = $region44
      $region43: #{tpu_custom_call.1} parent=5 // pred_region
        %s1182 = ssub.s32 %s13, 2
        // Predicated region
        $region45: #{tpu_custom_call.1} parent=43 // pred_check
          %p1183 = pneg %p115
        $region46: #{tpu_custom_call.1} parent=43 // pred_check_branch
          %1185 = sbr.rel (%p1183) target = $region48
        $region47: #{tpu_custom_call.1} parent=43 // pred_region
          %s1186 = sand.u32 %s100, 1
          %s1187 = scalar_lea.sflag [#allocation4], %s1186
          %s1188 = sand.u32 %s100, 1
          %s1189 = smul.addr %s1188, 256
          %s1190 = scalar_lea.vmem [#allocation5], %s1189
          %1191 = dma.done %s1187, 4096
        $region48: #{tpu_custom_call.1} parent=43 // pred_fallthru
          _
      $region44: #{tpu_custom_call.1} parent=5 // pred_fallthru
        _
    $region6: #{tpu_custom_call.1} parent=1 // loop_footer
      %s17 = sadd.s32 1, %s13
    $region7: #{tpu_custom_call.1} parent=1 // loop_footer_branch
      %12 = sbr.rel target = $region3
    $region8: #{tpu_custom_call.1} parent=1 // loop_exit
      _
    %1192 = vsyncpa [#allocation3], 1
    %s1193 = scalar_lea.sflag [#allocation3], 1
    %1194 = vsyncpa %s1193, 1
    %1195 = vsyncpa [#allocation4], 1
    %s1196 = scalar_lea.sflag [#allocation4], 1
    %1197 = vsyncpa %s1196, 1

// kernel: tpu_custom_call.1
$region0: #{tpu_custom_call.1}
  #allocation0 [shape = 'u32[]', space=smem, size = 0x4, offset = 0x4, fixed_abs, tag = 'smem constant byte address 0x4 - core index']
  #allocation1 [shape = 'u32[144,128]{1,0:T(1,128)}', space=vmem, size = 0x12000, scoped, tag = 'internal scratch']
  %s0 = inlined_call_operand.vmem [shape: s32[2048,1], index: 0, kind: input, shape index: {}]
  %s1 = inlined_call_operand.vmem [shape: f32[2048,128], index: 1, kind: input, shape index: {}]
  %s2 = inlined_call_operand.hbm [shape: f32[64,256], index: 2, kind: input, shape index: {}]
  %s3 = inlined_call_operand.hbm [shape: f32[2048,128], index: 3, kind: output, shape index: {}]
  %s4 = sld [smem:[#allocation0]]
  $region49: #{tpu_custom_call.1} parent=0
    _
  %s6 = ssub.s32 1, %s4
  %s7 = scalar_select 0, %s6, %s4
  $region1: #{tpu_custom_call.1} parent=0
    #allocation2 [shape = 'u8[65536]{0}', space=vmem, size = 0x10000, scoped, tag = 'input window, operand 2, single buffered']
    #allocation3 [shape = 's32[2]{0}', space=sflag, size = 0x8, scoped, tag = 'scoped memory for tpu_custom_call.1']
    #allocation4 [shape = 's32[2]{0}', space=sflag, size = 0x8, scoped, tag = 'scoped memory for tpu_custom_call.1']
    #allocation5 [shape = 'u8[262144]{0}', space=vmem, size = 0x40000, scoped, tag = 'output window, operand 0']
    %8 = vsyncpa [#allocation3], 0
    %9 = vsyncpa [#allocation4], 0
    %s10 = scalar_lea.sflag [#allocation4], 1
    %11 = vsyncpa %s10, 0
    loop: start=0, step=1, limit=10
    $region2: #{tpu_custom_call.1} parent=1 // loop_pre_header
      _
    $region3: #{tpu_custom_call.1} parent=1 // loop_header
      %s13 = sphi 0, %s17
      %p14 = scmp.ge.s32.totalorder %s13, 10
      %s23 = sphi 0, %s25
      %s26 = sphi 0, %s23
      %s27 = sphi 0, %s26
      %s43 = sphi 0, %s27
      %s49 = sphi 0, %s51
      %s52 = sphi 0, %s49
      %s53 = sphi 0, %s52
      %s69 = sphi 0, %s53
      %s73 = sphi 0, %s73
      %s75 = sphi 0, %s73
      %s76 = sphi 0, %s75
      %s90 = sphi 0, %s76
      %s96 = sphi 0, %s98
      %s99 = sphi 0, %s96
      %s100 = sphi 0, %s99
      %s116 = sphi 0, %s100
    $region4: #{tpu_custom_call.1} parent=1 // loop_header_branch
      %16 = sbr.rel (%p14) target = $region8
    $region5: #{tpu_custom_call.1} parent=1 // loop_body
      %s18 = ssub.s32 %s13, 1
      %s19 = ssub.s32 %s13, 2
      %s20 = sadd.s32 %s13, 1
      %s21 = ssub.s32 %s13, %s20
      %p22 = scmp.eq.s32.totalorder %s21, 0
      %s24 = sadd.s32 %s23, 1
      %s25 = scalar_select %p22, %s23, %s24
      %p28 = pneg %p22
      %p29 = scmp.eq.s32.totalorder %s13, 7
      %p30 = por %p28, %p29
      %p31 = scmp.ne.s32.totalorder %s23, %s26
      %p32 = scmp.eq.s32.totalorder %s13, 0
      %p33 = por %p31, %p32
      %p34 = scmp.ne.s32.totalorder %s23, %s26
      %p35 = scmp.eq.s32.totalorder %s18, 7
      %p36 = por %p34, %p35
      %p37 = scmp.ne.s32.totalorder %s26, %s27
      %p38 = scmp.eq.s32.totalorder %s18, 0
      %p39 = por %p37, %p38
      %p40 = scmp.ne.s32.totalorder %s26, %s27
      %p41 = scmp.eq.s32.totalorder %s19, 7
      %p42 = por %p40, %p41
      %p44 = scmp.ne.s32.totalorder %s27, %s43
      %p45 = scmp.eq.s32.totalorder %s19, 0
      %p46 = por %p44, %p45
      %s47 = ssub.s32 %s13, %s20
      %p48 = scmp.eq.s32.totalorder %s47, 0
      %s50 = sadd.s32 %s49, 1
      %s51 = scalar_select %p48, %s49, %s50
      %p54 = pneg %p48
      %p55 = scmp.eq.s32.totalorder %s13, 7
      %p56 = por %p54, %p55
      %p57 = scmp.ne.s32.totalorder %s49, %s52
      %p58 = scmp.eq.s32.totalorder %s13, 0
      %p59 = por %p57, %p58
      %p60 = scmp.ne.s32.totalorder %s49, %s52
      %p61 = scmp.eq.s32.totalorder %s18, 7
      %p62 = por %p60, %p61
      %p63 = scmp.ne.s32.totalorder %s52, %s53
      %p64 = scmp.eq.s32.totalorder %s18, 0
      %p65 = por %p63, %p64
      %p66 = scmp.ne.s32.totalorder %s52, %s53
      %p67 = scmp.eq.s32.totalorder %s19, 7
      %p68 = por %p66, %p67
      %p70 = scmp.ne.s32.totalorder %s53, %s69
      %p71 = scmp.eq.s32.totalorder %s19, 0
      %p72 = por %p70, %p71
      %s74 = sadd.s32 %s73, 1
      %p77 = scmp.eq.s32.totalorder %s13, 7
      %p78 = scmp.ne.s32.totalorder %s73, %s75
      %p79 = scmp.eq.s32.totalorder %s13, 0
      %p80 = por %p78, %p79
      %p81 = scmp.ne.s32.totalorder %s73, %s75
      %p82 = scmp.eq.s32.totalorder %s18, 7
      %p83 = por %p81, %p82
      %p84 = scmp.ne.s32.totalorder %s75, %s76
      %p85 = scmp.eq.s32.totalorder %s18, 0
      %p86 = por %p84, %p85
      %p87 = scmp.ne.s32.totalorder %s75, %s76
      %p88 = scmp.eq.s32.totalorder %s19, 7
      %p89 = por %p87, %p88
      %p91 = scmp.ne.s32.totalorder %s76, %s90
      %p92 = scmp.eq.s32.totalorder %s19, 0
      %p93 = por %p91, %p92
      %s94 = ssub.s32 %s13, %s20
      %p95 = scmp.eq.s32.totalorder %s94, 0
      %s97 = sadd.s32 %s96, 1
      %s98 = scalar_select %p95, %s96, %s97
      %p101 = pneg %p95
      %p102 = scmp.eq.s32.totalorder %s13, 7
      %p103 = por %p101, %p102
      %p104 = scmp.ne.s32.totalorder %s96, %s99
      %p105 = scmp.eq.s32.totalorder %s13, 0
      %p106 = por %p104, %p105
      %p107 = scmp.ne.s32.totalorder %s96, %s99
      %p108 = scmp.eq.s32.totalorder %s18, 7
      %p109 = por %p107, %p108
      %p110 = scmp.ne.s32.totalorder %s99, %s100
      %p111 = scmp.eq.s32.totalorder %s18, 0
      %p112 = por %p110, %p111
      %p113 = scmp.ne.s32.totalorder %s99, %s100
      %p114 = scmp.eq.s32.totalorder %s19, 7
      %p115 = por %p113, %p114
      %p117 = scmp.ne.s32.totalorder %s100, %s116
      %p118 = scmp.eq.s32.totalorder %s19, 0
      %p119 = por %p117, %p118
      %p120 = scmp.le.s32.totalorder 1, %s13
      %p121 = scmp.lt.s32.totalorder %s13, 9
      %p122 = pnand %p120, %p121
      %p123 = pneg %p122
      // Predicated region
      $region9: #{tpu_custom_call.1} parent=5 // pred_check
        _
      $region10: #{tpu_custom_call.1} parent=5 // pred_check_branch
        %125 = sbr.rel (%p122) target = $region12
      $region11: #{tpu_custom_call.1} parent=5 // pred_region
        %s126 = ssub.s32 %s13, 1
        // Predicated region
        $region13: #{tpu_custom_call.1} parent=11 // pred_check
          %p127 = pneg %p86
        $region14: #{tpu_custom_call.1} parent=11 // pred_check_branch
          %129 = sbr.rel (%p127) target = $region16
        $region15: #{tpu_custom_call.1} parent=11 // pred_region
          %s131 = ssub.s32 2048, 2048
          %132 = vsyncadd [#allocation3], %s131
          %s133 = sshll.u32 [#allocation2], 4
          %s134 = int_to_ptr.vmem [resolvable:$true] %s133
          %139 = dma.hbm_to_vmem [thread:$0]  %s2, 2048, %s134, [#allocation3], 256, 256, 16
        $region16: #{tpu_custom_call.1} parent=11 // pred_fallthru
          _
      $region12: #{tpu_custom_call.1} parent=5 // pred_fallthru
        _
      %p140 = scmp.lt.s32.totalorder %s13, 8
      // Predicated region
      $region17: #{tpu_custom_call.1} parent=5 // pred_check
        %p141 = pneg %p140
      $region18: #{tpu_custom_call.1} parent=5 // pred_check_branch
        %143 = sbr.rel (%p141) target = $region20
      $region19: #{tpu_custom_call.1} parent=5 // pred_region
        // Predicated region
        $region21: #{tpu_custom_call.1} parent=19 // pred_check
          %p144 = pneg %p33
        $region22: #{tpu_custom_call.1} parent=19 // pred_check_branch
          %146 = sbr.rel (%p144) target = $region24
        $region23: #{tpu_custom_call.1} parent=19 // pred_region
          %s147 = smul.u32 32, %s13
          %p148 = scmp.lt.s32.totalorder %s147, 255
          %s149 = scalar_select %p148, %s147, 255
          %s150 = smul.addr %s149, 8
          %s151 = scalar_lea.vmem %s0, %s150
          %s152 = smul.u32 32, %s13
        $region24: #{tpu_custom_call.1} parent=19 // pred_fallthru
          _
        // Predicated region
        $region25: #{tpu_custom_call.1} parent=19 // pred_check
          %p153 = pneg %p59
        $region26: #{tpu_custom_call.1} parent=19 // pred_check_branch
          %155 = sbr.rel (%p153) target = $region28
        $region27: #{tpu_custom_call.1} parent=19 // pred_region
          %s156 = smul.u32 32, %s13
          %p157 = scmp.lt.s32.totalorder %s156, 255
          %s158 = scalar_select %p157, %s156, 255
          %s159 = smul.addr %s158, 8
          %s160 = scalar_lea.vmem %s1, %s159
          %s161 = smul.u32 32, %s13
        $region28: #{tpu_custom_call.1} parent=19 // pred_fallthru
          _
      $region20: #{tpu_custom_call.1} parent=5 // pred_fallthru
        _
      %p162 = scmp.le.s32.totalorder 1, %s13
      %p163 = scmp.lt.s32.totalorder %s13, 9
      %p164 = pnand %p162, %p163
      %p165 = pneg %p164
      // Predicated region
      $region29: #{tpu_custom_call.1} parent=5 // pred_check
        _
      $region30: #{tpu_custom_call.1} parent=5 // pred_check_branch
        %167 = sbr.rel (%p164) target = $region32
      $region31: #{tpu_custom_call.1} parent=5 // pred_region
        %s168 = ssub.s32 %s13, 1
        // Predicated region
        $region33: #{tpu_custom_call.1} parent=31 // pred_check
          %p169 = pneg %p86
        $region34: #{tpu_custom_call.1} parent=31 // pred_check_branch
          %171 = sbr.rel (%p169) target = $region36
        $region35: #{tpu_custom_call.1} parent=31 // pred_region
          %172 = dma.done [#allocation3], 2048
        $region36: #{tpu_custom_call.1} parent=31 // pred_fallthru
          _
        %s173 = smul.u32 32, %s18
        %p174 = scmp.lt.s32.totalorder %s173, 255
        %s175 = scalar_select %p174, %s173, 255
        %s176 = smul.addr %s175, 8
        %s177 = scalar_lea.vmem %s0, %s176
        %p178 = pneg %p39
        %p179 = pneg %p36
        %s180 = smul.u32 32, %s18
        %p181 = scmp.lt.s32.totalorder %s180, 255
        %s182 = scalar_select %p181, %s180, 255
        %s183 = smul.addr %s182, 8
        %s184 = scalar_lea.vmem %s1, %s183
        %p185 = pneg %p65
        %p186 = pneg %p62
        %p187 = pneg %p86
        %p188 = pneg %p83
        %p189 = pneg %p112
        %p190 = pneg %p109
        %s191 = sand.u32 %s99, 1
        %s192 = scalar_lea.sflag [#allocation4], %s191
        %s193 = sand.u32 %s99, 1
        %s194 = smul.addr %s193, 256
        %s195 = scalar_lea.vmem [#allocation5], %s194
        %s196 = smul.u32 32, %s18
        %p197 = scmp.lt.s32.totalorder %s196, 255
        %s198 = scalar_select %p197, %s196, 255
        %s199 = smul.addr %s198, 8
        %s200 = scalar_lea.vmem %s0, %s199
        %s201 = smul.u32 32, %s18
        %s202 = smul.u32 32, %s18
        %p203 = scmp.lt.s32.totalorder %s202, 255
        %s204 = scalar_select %p203, %s202, 255
        %s205 = smul.addr %s204, 8
        %s206 = scalar_lea.vmem %s1, %s205
        %s207 = smul.u32 32, %s18
        %s208 = smul.u32 32, %s18
        %v209 = vld [vmem:[%s200] sm:$0xff]
        %v210 = vld [vmem:[%s200 + $0x8] sm:$0xff]
        %v211 = vld [vmem:[%s200 + $0x10] sm:$0xff]
        %v212 = vld [vmem:[%s200 + $0x18] sm:$0xff]
        %v213 = vld [vmem:[%s200 + $0x20] sm:$0xff]
        %v214 = vld [vmem:[%s200 + $0x28] sm:$0xff]
        %v215 = vld [vmem:[%s200 + $0x30] sm:$0xff]
        %v216 = vld [vmem:[%s200 + $0x38] sm:$0xff]
        %v217 = vld [vmem:[%s200 + $0x40] sm:$0xff]
        %v218 = vld [vmem:[%s200 + $0x48] sm:$0xff]
        %v219 = vld [vmem:[%s200 + $0x50] sm:$0xff]
        %v220 = vld [vmem:[%s200 + $0x58] sm:$0xff]
        %v221 = vld [vmem:[%s200 + $0x60] sm:$0xff]
        %v222 = vld [vmem:[%s200 + $0x68] sm:$0xff]
        %v223 = vld [vmem:[%s200 + $0x70] sm:$0xff]
        %v224 = vld [vmem:[%s200 + $0x78] sm:$0xff]
        %v225 = vld [vmem:[%s200 + $0x80] sm:$0xff]
        %v226 = vld [vmem:[%s200 + $0x88] sm:$0xff]
        %v227 = vld [vmem:[%s200 + $0x90] sm:$0xff]
        %v228 = vld [vmem:[%s200 + $0x98] sm:$0xff]
        %v229 = vld [vmem:[%s200 + $0xa0] sm:$0xff]
        %v230 = vld [vmem:[%s200 + $0xa8] sm:$0xff]
        %v231 = vld [vmem:[%s200 + $0xb0] sm:$0xff]
        %v232 = vld [vmem:[%s200 + $0xb8] sm:$0xff]
        %v233 = vld [vmem:[%s200 + $0xc0] sm:$0xff]
        %v234 = vld [vmem:[%s200 + $0xc8] sm:$0xff]
        %v235 = vld [vmem:[%s200 + $0xd0] sm:$0xff]
        %v236 = vld [vmem:[%s200 + $0xd8] sm:$0xff]
        %v237 = vld [vmem:[%s200 + $0xe0] sm:$0xff]
        %v238 = vld [vmem:[%s200 + $0xe8] sm:$0xff]
        %v239 = vld [vmem:[%s200 + $0xf0] sm:$0xff]
        %v240 = vld [vmem:[%s200 + $0xf8] sm:$0xff]
        %v241 = vlaneseq
        %v242 = vand.u32 %v241, 127
        %243 = vset.pattern.permute.xlu0 0
        %244 = vperm.xlu0 %243, %v209
        %v245 = vpop.permute.xlu0 %244
        %246 = vset.pattern.permute.xlu0 0
        %247 = vperm.xlu0 %246, %v210
        %v248 = vpop.permute.xlu0 %247
        %249 = vset.pattern.permute.xlu0 0
        %250 = vperm.xlu0 %249, %v211
        %v251 = vpop.permute.xlu0 %250
        %252 = vset.pattern.permute.xlu0 0
        %253 = vperm.xlu0 %252, %v212
        %v254 = vpop.permute.xlu0 %253
        %255 = vset.pattern.permute.xlu0 0
        %256 = vperm.xlu0 %255, %v213
        %v257 = vpop.permute.xlu0 %256
        %258 = vset.pattern.permute.xlu0 0
        %259 = vperm.xlu0 %258, %v214
        %v260 = vpop.permute.xlu0 %259
        %261 = vset.pattern.permute.xlu0 0
        %262 = vperm.xlu0 %261, %v215
        %v263 = vpop.permute.xlu0 %262
        %264 = vset.pattern.permute.xlu0 0
        %265 = vperm.xlu0 %264, %v216
        %v266 = vpop.permute.xlu0 %265
        %267 = vset.pattern.permute.xlu0 0
        %268 = vperm.xlu0 %267, %v217
        %v269 = vpop.permute.xlu0 %268
        %270 = vset.pattern.permute.xlu0 0
        %271 = vperm.xlu0 %270, %v218
        %v272 = vpop.permute.xlu0 %271
        %273 = vset.pattern.permute.xlu0 0
        %274 = vperm.xlu0 %273, %v219
        %v275 = vpop.permute.xlu0 %274
        %276 = vset.pattern.permute.xlu0 0
        %277 = vperm.xlu0 %276, %v220
        %v278 = vpop.permute.xlu0 %277
        %279 = vset.pattern.permute.xlu0 0
        %280 = vperm.xlu0 %279, %v221
        %v281 = vpop.permute.xlu0 %280
        %282 = vset.pattern.permute.xlu0 0
        %283 = vperm.xlu0 %282, %v222
        %v284 = vpop.permute.xlu0 %283
        %285 = vset.pattern.permute.xlu0 0
        %286 = vperm.xlu0 %285, %v223
        %v287 = vpop.permute.xlu0 %286
        %288 = vset.pattern.permute.xlu0 0
        %289 = vperm.xlu0 %288, %v224
        %v290 = vpop.permute.xlu0 %289
        %291 = vset.pattern.permute.xlu0 0
        %292 = vperm.xlu0 %291, %v225
        %v293 = vpop.permute.xlu0 %292
        %294 = vset.pattern.permute.xlu0 0
        %295 = vperm.xlu0 %294, %v226
        %v296 = vpop.permute.xlu0 %295
        %297 = vset.pattern.permute.xlu0 0
        %298 = vperm.xlu0 %297, %v227
        %v299 = vpop.permute.xlu0 %298
        %300 = vset.pattern.permute.xlu0 0
        %301 = vperm.xlu0 %300, %v228
        %v302 = vpop.permute.xlu0 %301
        %303 = vset.pattern.permute.xlu0 0
        %304 = vperm.xlu0 %303, %v229
        %v305 = vpop.permute.xlu0 %304
        %306 = vset.pattern.permute.xlu0 0
        %307 = vperm.xlu0 %306, %v230
        %v308 = vpop.permute.xlu0 %307
        %309 = vset.pattern.permute.xlu0 0
        %310 = vperm.xlu0 %309, %v231
        %v311 = vpop.permute.xlu0 %310
        %312 = vset.pattern.permute.xlu0 0
        %313 = vperm.xlu0 %312, %v232
        %v314 = vpop.permute.xlu0 %313
        %315 = vset.pattern.permute.xlu0 0
        %316 = vperm.xlu0 %315, %v233
        %v317 = vpop.permute.xlu0 %316
        %318 = vset.pattern.permute.xlu0 0
        %319 = vperm.xlu0 %318, %v234
        %v320 = vpop.permute.xlu0 %319
        %321 = vset.pattern.permute.xlu0 0
        %322 = vperm.xlu0 %321, %v235
        %v323 = vpop.permute.xlu0 %322
        %324 = vset.pattern.permute.xlu0 0
        %325 = vperm.xlu0 %324, %v236
        %v326 = vpop.permute.xlu0 %325
        %327 = vset.pattern.permute.xlu0 0
        %328 = vperm.xlu0 %327, %v237
        %v329 = vpop.permute.xlu0 %328
        %330 = vset.pattern.permute.xlu0 0
        %331 = vperm.xlu0 %330, %v238
        %v332 = vpop.permute.xlu0 %331
        %333 = vset.pattern.permute.xlu0 0
        %334 = vperm.xlu0 %333, %v239
        %v335 = vpop.permute.xlu0 %334
        %336 = vset.pattern.permute.xlu0 0
        %337 = vperm.xlu0 %336, %v240
        %v338 = vpop.permute.xlu0 %337
        %vm339 = vcmp.eq.s32.totalorder %v242, %v245
        %vm340 = vcmp.eq.s32.totalorder %v242, %v248
        %vm341 = vcmp.eq.s32.totalorder %v242, %v251
        %vm342 = vcmp.eq.s32.totalorder %v242, %v254
        %vm343 = vcmp.eq.s32.totalorder %v242, %v257
        %vm344 = vcmp.eq.s32.totalorder %v242, %v260
        %vm345 = vcmp.eq.s32.totalorder %v242, %v263
        %vm346 = vcmp.eq.s32.totalorder %v242, %v266
        %vm347 = vcmp.eq.s32.totalorder %v242, %v269
        %vm348 = vcmp.eq.s32.totalorder %v242, %v272
        %vm349 = vcmp.eq.s32.totalorder %v242, %v275
        %vm350 = vcmp.eq.s32.totalorder %v242, %v278
        %vm351 = vcmp.eq.s32.totalorder %v242, %v281
        %vm352 = vcmp.eq.s32.totalorder %v242, %v284
        %vm353 = vcmp.eq.s32.totalorder %v242, %v287
        %vm354 = vcmp.eq.s32.totalorder %v242, %v290
        %vm355 = vcmp.eq.s32.totalorder %v242, %v293
        %vm356 = vcmp.eq.s32.totalorder %v242, %v296
        %vm357 = vcmp.eq.s32.totalorder %v242, %v299
        %vm358 = vcmp.eq.s32.totalorder %v242, %v302
        %vm359 = vcmp.eq.s32.totalorder %v242, %v305
        %vm360 = vcmp.eq.s32.totalorder %v242, %v308
        %vm361 = vcmp.eq.s32.totalorder %v242, %v311
        %vm362 = vcmp.eq.s32.totalorder %v242, %v314
        %vm363 = vcmp.eq.s32.totalorder %v242, %v317
        %vm364 = vcmp.eq.s32.totalorder %v242, %v320
        %vm365 = vcmp.eq.s32.totalorder %v242, %v323
        %vm366 = vcmp.eq.s32.totalorder %v242, %v326
        %vm367 = vcmp.eq.s32.totalorder %v242, %v329
        %vm368 = vcmp.eq.s32.totalorder %v242, %v332
        %vm369 = vcmp.eq.s32.totalorder %v242, %v335
        %vm370 = vcmp.eq.s32.totalorder %v242, %v338
        %v371 = vsel %vm339, 1, 0
        %v372 = vsel %vm340, 1, 0
        %v373 = vsel %vm341, 1, 0
        %v374 = vsel %vm342, 1, 0
        %v375 = vsel %vm343, 1, 0
        %v376 = vsel %vm344, 1, 0
        %v377 = vsel %vm345, 1, 0
        %v378 = vsel %vm346, 1, 0
        %v379 = vsel %vm347, 1, 0
        %v380 = vsel %vm348, 1, 0
        %v381 = vsel %vm349, 1, 0
        %v382 = vsel %vm350, 1, 0
        %v383 = vsel %vm351, 1, 0
        %v384 = vsel %vm352, 1, 0
        %v385 = vsel %vm353, 1, 0
        %v386 = vsel %vm354, 1, 0
        %v387 = vsel %vm355, 1, 0
        %v388 = vsel %vm356, 1, 0
        %v389 = vsel %vm357, 1, 0
        %v390 = vsel %vm358, 1, 0
        %v391 = vsel %vm359, 1, 0
        %v392 = vsel %vm360, 1, 0
        %v393 = vsel %vm361, 1, 0
        %v394 = vsel %vm362, 1, 0
        %v395 = vsel %vm363, 1, 0
        %v396 = vsel %vm364, 1, 0
        %v397 = vsel %vm365, 1, 0
        %v398 = vsel %vm366, 1, 0
        %v399 = vsel %vm367, 1, 0
        %v400 = vsel %vm368, 1, 0
        %v401 = vsel %vm369, 1, 0
        %v402 = vsel %vm370, 1, 0
        %v403 = vcvt.s32.f32 %v371
        %v404 = vcvt.s32.f32 %v372
        %v405 = vcvt.s32.f32 %v373
        %v406 = vcvt.s32.f32 %v374
        %v407 = vcvt.s32.f32 %v375
        %v408 = vcvt.s32.f32 %v376
        %v409 = vcvt.s32.f32 %v377
        %v410 = vcvt.s32.f32 %v378
        %v411 = vcvt.s32.f32 %v379
        %v412 = vcvt.s32.f32 %v380
        %v413 = vcvt.s32.f32 %v381
        %v414 = vcvt.s32.f32 %v382
        %v415 = vcvt.s32.f32 %v383
        %v416 = vcvt.s32.f32 %v384
        %v417 = vcvt.s32.f32 %v385
        %v418 = vcvt.s32.f32 %v386
        %v419 = vcvt.s32.f32 %v387
        %v420 = vcvt.s32.f32 %v388
        %v421 = vcvt.s32.f32 %v389
        %v422 = vcvt.s32.f32 %v390
        %v423 = vcvt.s32.f32 %v391
        %v424 = vcvt.s32.f32 %v392
        %v425 = vcvt.s32.f32 %v393
        %v426 = vcvt.s32.f32 %v394
        %v427 = vcvt.s32.f32 %v395
        %v428 = vcvt.s32.f32 %v396
        %v429 = vcvt.s32.f32 %v397
        %v430 = vcvt.s32.f32 %v398
        %v431 = vcvt.s32.f32 %v399
        %v432 = vcvt.s32.f32 %v400
        %v433 = vcvt.s32.f32 %v401
        %v434 = vcvt.s32.f32 %v402
        %v435 = vld [vmem:[#allocation2] sm:$0xff]
        %v436 = vld [vmem:[#allocation2 + $0x8] sm:$0xff]
        %v437 = vld [vmem:[#allocation2 + $0x10] sm:$0xff]
        %v438 = vld [vmem:[#allocation2 + $0x18] sm:$0xff]
        %v439 = vld [vmem:[#allocation2 + $0x20] sm:$0xff]
        %v440 = vld [vmem:[#allocation2 + $0x28] sm:$0xff]
        %v441 = vld [vmem:[#allocation2 + $0x30] sm:$0xff]
        %v442 = vld [vmem:[#allocation2 + $0x38] sm:$0xff]
        %v443 = vld [vmem:[#allocation2 + $0x40] sm:$0xff]
        %v444 = vld [vmem:[#allocation2 + $0x48] sm:$0xff]
        %v445 = vld [vmem:[#allocation2 + $0x50] sm:$0xff]
        %v446 = vld [vmem:[#allocation2 + $0x58] sm:$0xff]
        %v447 = vld [vmem:[#allocation2 + $0x60] sm:$0xff]
        %v448 = vld [vmem:[#allocation2 + $0x68] sm:$0xff]
        %v449 = vld [vmem:[#allocation2 + $0x70] sm:$0xff]
        %v450 = vld [vmem:[#allocation2 + $0x78] sm:$0xff]
        %vm451 = vcmask 523264
        %v453 = vsel %vm451, %v403, 0
        %v456 = vsel %vm451, %v404, 0
        %v459 = vsel %vm451, %v405, 0
        %v462 = vsel %vm451, %v406, 0
        %v465 = vsel %vm451, %v407, 0
        %v468 = vsel %vm451, %v408, 0
        %v471 = vsel %vm451, %v409, 0
        %v474 = vsel %vm451, %v410, 0
        %v477 = vsel %vm451, %v411, 0
        %v480 = vsel %vm451, %v412, 0
        %v483 = vsel %vm451, %v413, 0
        %v486 = vsel %vm451, %v414, 0
        %v489 = vsel %vm451, %v415, 0
        %v492 = vsel %vm451, %v416, 0
        %v495 = vsel %vm451, %v417, 0
        %v498 = vsel %vm451, %v418, 0
        %v501 = vsel %vm451, %v419, 0
        %v504 = vsel %vm451, %v420, 0
        %v507 = vsel %vm451, %v421, 0
        %v510 = vsel %vm451, %v422, 0
        %v513 = vsel %vm451, %v423, 0
        %v516 = vsel %vm451, %v424, 0
        %v519 = vsel %vm451, %v425, 0
        %v522 = vsel %vm451, %v426, 0
        %v525 = vsel %vm451, %v427, 0
        %v528 = vsel %vm451, %v428, 0
        %v531 = vsel %vm451, %v429, 0
        %v534 = vsel %vm451, %v430, 0
        %v537 = vsel %vm451, %v431, 0
        %v540 = vsel %vm451, %v432, 0
        %v543 = vsel %vm451, %v433, 0
        %v546 = vsel %vm451, %v434, 0
        %548 = vmatprep.subr.mxu0 %v436
        %549 = vmatpush1.msra.mxu0 %v435
        %550 = vmatprep.subr.mxu0 %v438
        %551 = vmatpush1.msra.mxu0 %v437
        %552 = vmatprep.subr.mxu0 %v440
        %553 = vmatpush1.msra.mxu0 %v439
        %554 = vmatprep.subr.mxu0 %v442
        %555 = vmatpush1.msra.mxu0 %v441
        %556 = vmatprep.subr.mxu0 %v444
        %557 = vmatpush1.msra.mxu0 %v443
        %558 = vmatprep.subr.mxu0 %v446
        %559 = vmatpush1.msra.mxu0 %v445
        %560 = vmatprep.subr.mxu0 %v448
        %561 = vmatpush1.msra.mxu0 %v447
        %562 = vmatprep.subr.mxu0 %v450
        %563 = vmatpush1.msra.mxu0 %v449
        %564 = vmatprep.subr.mxu0 0.0
        %565 = vmatpush1.msra.mxu0 0.0
        %566 = vmatprep.subr.mxu0 0.0
        %567 = vmatpush1.msra.mxu0 0.0
        %568 = vmatprep.subr.mxu0 0.0
        %569 = vmatpush1.msra.mxu0 0.0
        %570 = vmatprep.subr.mxu0 0.0
        %571 = vmatpush1.msra.mxu0 0.0
        %572 = vmatprep.subr.mxu0 0.0
        %573 = vmatpush1.msra.mxu0 0.0
        %574 = vmatprep.subr.mxu0 0.0
        %575 = vmatpush1.msra.mxu0 0.0
        %576 = vmatprep.subr.mxu0 0.0
        %577 = vmatpush1.msra.mxu0 0.0
        %578 = vmatprep.subr.mxu0 0.0
        %579 = vmatpush1.msra.mxu0 0.0
        %580 = vmatprep.subr.mxu0 0.0
        %581 = vmatpush1.msra.mxu0 0.0
        %582 = vmatprep.subr.mxu0 0.0
        %583 = vmatpush1.msra.mxu0 0.0
        %584 = vmatprep.subr.mxu0 0.0
        %585 = vmatpush1.msra.mxu0 0.0
        %586 = vmatprep.subr.mxu0 0.0
        %587 = vmatpush1.msra.mxu0 0.0
        %588 = vmatprep.subr.mxu0 0.0
        %589 = vmatpush1.msra.mxu0 0.0
        %590 = vmatprep.subr.mxu0 0.0
        %591 = vmatpush1.msra.mxu0 0.0
        %592 = vmatprep.subr.mxu0 0.0
        %593 = vmatpush1.msra.mxu0 0.0
        %594 = vmatprep.subr.mxu0 0.0
        %595 = vmatpush1.msra.mxu0 0.0
        %596 = vmatprep.subr.mxu0 0.0
        %597 = vmatpush1.msra.mxu0 0.0
        %598 = vmatprep.subr.mxu0 0.0
        %599 = vmatpush1.msra.mxu0 0.0
        %600 = vmatprep.subr.mxu0 0.0
        %601 = vmatpush1.msra.mxu0 0.0
        %602 = vmatprep.subr.mxu0 0.0
        %603 = vmatpush1.msra.mxu0 0.0
        %604 = vmatprep.subr.mxu0 0.0
        %605 = vmatpush1.msra.mxu0 0.0
        %606 = vmatprep.subr.mxu0 0.0
        %607 = vmatpush1.msra.mxu0 0.0
        %608 = vmatprep.subr.mxu0 0.0
        %609 = vmatpush1.msra.mxu0 0.0
        %610 = vmatprep.subr.mxu0 0.0
        %611 = vmatpush1.msra.mxu0 0.0
        %612 = vmatprep.mubr.f32.mxu0 0.0
        %613 = vmatmul.mubr.f32.gmra.mrb[0].mxu0 %v453
        %v614 = vpop.f32.mrb[0].mxu0
        %v615 = vadd.f32 0.0, %v614
        %v616 = vpop.f32.mrb[0].mxu0
        %v617 = vadd.f32 0.0, %v616
        %618 = vmatprep.mubr.f32.mxu0 0.0
        %619 = vmatmul.mubr.f32.gmra.mrb[0].mxu0 %v456
        %v620 = vpop.f32.mrb[0].mxu0
        %v621 = vadd.f32 0.0, %v620
        %v622 = vpop.f32.mrb[0].mxu0
        %v623 = vadd.f32 0.0, %v622
        %624 = vmatprep.mubr.f32.mxu0 0.0
        %625 = vmatmul.mubr.f32.gmra.mrb[0].mxu0 %v459
        %v626 = vpop.f32.mrb[0].mxu0
        %v627 = vadd.f32 0.0, %v626
        %v628 = vpop.f32.mrb[0].mxu0
        %v629 = vadd.f32 0.0, %v628
        %630 = vmatprep.mubr.f32.mxu0 0.0
        %631 = vmatmul.mubr.f32.gmra.mrb[0].mxu0 %v462
        %v632 = vpop.f32.mrb[0].mxu0
        %v633 = vadd.f32 0.0, %v632
        %v634 = vpop.f32.mrb[0].mxu0
        %v635 = vadd.f32 0.0, %v634
        %636 = vmatprep.mubr.f32.mxu0 0.0
        %637 = vmatmul.mubr.f32.gmra.mrb[0].mxu0 %v465
        %v638 = vpop.f32.mrb[0].mxu0
        %v639 = vadd.f32 0.0, %v638
        %v640 = vpop.f32.mrb[0].mxu0
        %v641 = vadd.f32 0.0, %v640
        %642 = vmatprep.mubr.f32.mxu0 0.0
        %643 = vmatmul.mubr.f32.gmra.mrb[0].mxu0 %v468
        %v644 = vpop.f32.mrb[0].mxu0
        %v645 = vadd.f32 0.0, %v644
        %v646 = vpop.f32.mrb[0].mxu0
        %v647 = vadd.f32 0.0, %v646
        %648 = vmatprep.mubr.f32.mxu0 0.0
        %649 = vmatmul.mubr.f32.gmra.mrb[0].mxu0 %v471
        %v650 = vpop.f32.mrb[0].mxu0
        %v651 = vadd.f32 0.0, %v650
        %v652 = vpop.f32.mrb[0].mxu0
        %v653 = vadd.f32 0.0, %v652
        %654 = vmatprep.mubr.f32.mxu0 0.0
        %655 = vmatmul.mubr.f32.gmra.mrb[0].mxu0 %v474
        %v656 = vpop.f32.mrb[0].mxu0
        %v657 = vadd.f32 0.0, %v656
        %v658 = vpop.f32.mrb[0].mxu0
        %v659 = vadd.f32 0.0, %v658
        %660 = vmatprep.mubr.f32.mxu0 0.0
        %661 = vmatmul.mubr.f32.gmra.mrb[0].mxu0 %v477
        %v662 = vpop.f32.mrb[0].mxu0
        %v663 = vadd.f32 0.0, %v662
        %v664 = vpop.f32.mrb[0].mxu0
        %v665 = vadd.f32 0.0, %v664
        %666 = vmatprep.mubr.f32.mxu0 0.0
        %667 = vmatmul.mubr.f32.gmra.mrb[0].mxu0 %v480
        %v668 = vpop.f32.mrb[0].mxu0
        %v669 = vadd.f32 0.0, %v668
        %v670 = vpop.f32.mrb[0].mxu0
        %v671 = vadd.f32 0.0, %v670
        %672 = vmatprep.mubr.f32.mxu0 0.0
        %673 = vmatmul.mubr.f32.gmra.mrb[0].mxu0 %v483
        %v674 = vpop.f32.mrb[0].mxu0
        %v675 = vadd.f32 0.0, %v674
        %v676 = vpop.f32.mrb[0].mxu0
        %v677 = vadd.f32 0.0, %v676
        %678 = vmatprep.mubr.f32.mxu0 0.0
        %679 = vmatmul.mubr.f32.gmra.mrb[0].mxu0 %v486
        %v680 = vpop.f32.mrb[0].mxu0
        %v681 = vadd.f32 0.0, %v680
        %v682 = vpop.f32.mrb[0].mxu0
        %v683 = vadd.f32 0.0, %v682
        %684 = vmatprep.mubr.f32.mxu0 0.0
        %685 = vmatmul.mubr.f32.gmra.mrb[0].mxu0 %v489
        %v686 = vpop.f32.mrb[0].mxu0
        %v687 = vadd.f32 0.0, %v686
        %v688 = vpop.f32.mrb[0].mxu0
        %v689 = vadd.f32 0.0, %v688
        %690 = vmatprep.mubr.f32.mxu0 0.0
        %691 = vmatmul.mubr.f32.gmra.mrb[0].mxu0 %v492
        %v692 = vpop.f32.mrb[0].mxu0
        %v693 = vadd.f32 0.0, %v692
        %v694 = vpop.f32.mrb[0].mxu0
        %v695 = vadd.f32 0.0, %v694
        %696 = vmatprep.mubr.f32.mxu0 0.0
        %697 = vmatmul.mubr.f32.gmra.mrb[0].mxu0 %v495
        %v698 = vpop.f32.mrb[0].mxu0
        %v699 = vadd.f32 0.0, %v698
        %v700 = vpop.f32.mrb[0].mxu0
        %v701 = vadd.f32 0.0, %v700
        %702 = vmatprep.mubr.f32.mxu0 0.0
        %703 = vmatmul.mubr.f32.gmra.mrb[0].mxu0 %v498
        %v704 = vpop.f32.mrb[0].mxu0
        %v705 = vadd.f32 0.0, %v704
        %v706 = vpop.f32.mrb[0].mxu0
        %v707 = vadd.f32 0.0, %v706
        %708 = vmatprep.mubr.f32.mxu0 0.0
        %709 = vmatmul.mubr.f32.gmra.mrb[0].mxu0 %v501
        %v710 = vpop.f32.mrb[0].mxu0
        %v711 = vadd.f32 0.0, %v710
        %v712 = vpop.f32.mrb[0].mxu0
        %v713 = vadd.f32 0.0, %v712
        %714 = vmatprep.mubr.f32.mxu0 0.0
        %715 = vmatmul.mubr.f32.gmra.mrb[0].mxu0 %v504
        %v716 = vpop.f32.mrb[0].mxu0
        %v717 = vadd.f32 0.0, %v716
        %v718 = vpop.f32.mrb[0].mxu0
        %v719 = vadd.f32 0.0, %v718
        %720 = vmatprep.mubr.f32.mxu0 0.0
        %721 = vmatmul.mubr.f32.gmra.mrb[0].mxu0 %v507
        %v722 = vpop.f32.mrb[0].mxu0
        %v723 = vadd.f32 0.0, %v722
        %v724 = vpop.f32.mrb[0].mxu0
        %v725 = vadd.f32 0.0, %v724
        %726 = vmatprep.mubr.f32.mxu0 0.0
        %727 = vmatmul.mubr.f32.gmra.mrb[0].mxu0 %v510
        %v728 = vpop.f32.mrb[0].mxu0
        %v729 = vadd.f32 0.0, %v728
        %v730 = vpop.f32.mrb[0].mxu0
        %v731 = vadd.f32 0.0, %v730
        %732 = vmatprep.mubr.f32.mxu0 0.0
        %733 = vmatmul.mubr.f32.gmra.mrb[0].mxu0 %v513
        %v734 = vpop.f32.mrb[0].mxu0
        %v735 = vadd.f32 0.0, %v734
        %v736 = vpop.f32.mrb[0].mxu0
        %v737 = vadd.f32 0.0, %v736
        %738 = vmatprep.mubr.f32.mxu0 0.0
        %739 = vmatmul.mubr.f32.gmra.mrb[0].mxu0 %v516
        %v740 = vpop.f32.mrb[0].mxu0
        %v741 = vadd.f32 0.0, %v740
        %v742 = vpop.f32.mrb[0].mxu0
        %v743 = vadd.f32 0.0, %v742
        %744 = vmatprep.mubr.f32.mxu0 0.0
        %745 = vmatmul.mubr.f32.gmra.mrb[0].mxu0 %v519
        %v746 = vpop.f32.mrb[0].mxu0
        %v747 = vadd.f32 0.0, %v746
        %v748 = vpop.f32.mrb[0].mxu0
        %v749 = vadd.f32 0.0, %v748
        %750 = vmatprep.mubr.f32.mxu0 0.0
        %751 = vmatmul.mubr.f32.gmra.mrb[0].mxu0 %v522
        %v752 = vpop.f32.mrb[0].mxu0
        %v753 = vadd.f32 0.0, %v752
        %v754 = vpop.f32.mrb[0].mxu0
        %v755 = vadd.f32 0.0, %v754
        %756 = vmatprep.mubr.f32.mxu0 0.0
        %757 = vmatmul.mubr.f32.gmra.mrb[0].mxu0 %v525
        %v758 = vpop.f32.mrb[0].mxu0
        %v759 = vadd.f32 0.0, %v758
        %v760 = vpop.f32.mrb[0].mxu0
        %v761 = vadd.f32 0.0, %v760
        %762 = vmatprep.mubr.f32.mxu0 0.0
        %763 = vmatmul.mubr.f32.gmra.mrb[0].mxu0 %v528
        %v764 = vpop.f32.mrb[0].mxu0
        %v765 = vadd.f32 0.0, %v764
        %v766 = vpop.f32.mrb[0].mxu0
        %v767 = vadd.f32 0.0, %v766
        %768 = vmatprep.mubr.f32.mxu0 0.0
        %769 = vmatmul.mubr.f32.gmra.mrb[0].mxu0 %v531
        %v770 = vpop.f32.mrb[0].mxu0
        %v771 = vadd.f32 0.0, %v770
        %v772 = vpop.f32.mrb[0].mxu0
        %v773 = vadd.f32 0.0, %v772
        %774 = vmatprep.mubr.f32.mxu0 0.0
        %775 = vmatmul.mubr.f32.gmra.mrb[0].mxu0 %v534
        %v776 = vpop.f32.mrb[0].mxu0
        %v777 = vadd.f32 0.0, %v776
        %v778 = vpop.f32.mrb[0].mxu0
        %v779 = vadd.f32 0.0, %v778
        %780 = vmatprep.mubr.f32.mxu0 0.0
        %781 = vmatmul.mubr.f32.gmra.mrb[0].mxu0 %v537
        %v782 = vpop.f32.mrb[0].mxu0
        %v783 = vadd.f32 0.0, %v782
        %v784 = vpop.f32.mrb[0].mxu0
        %v785 = vadd.f32 0.0, %v784
        %786 = vmatprep.mubr.f32.mxu0 0.0
        %787 = vmatmul.mubr.f32.gmra.mrb[0].mxu0 %v540
        %v788 = vpop.f32.mrb[0].mxu0
        %v789 = vadd.f32 0.0, %v788
        %v790 = vpop.f32.mrb[0].mxu0
        %v791 = vadd.f32 0.0, %v790
        %792 = vmatprep.mubr.f32.mxu0 0.0
        %793 = vmatmul.mubr.f32.gmra.mrb[0].mxu0 %v543
        %v794 = vpop.f32.mrb[0].mxu0
        %v795 = vadd.f32 0.0, %v794
        %v796 = vpop.f32.mrb[0].mxu0
        %v797 = vadd.f32 0.0, %v796
        %798 = vmatprep.mubr.f32.mxu0 0.0
        %799 = vmatmul.mubr.f32.gmra.mrb[0].mxu0 %v546
        %v800 = vpop.f32.mrb[0].mxu0
        %v801 = vadd.f32 0.0, %v800
        %v802 = vpop.f32.mrb[0].mxu0
        %v803 = vadd.f32 0.0, %v802
        %804 = vdwg.mxu0
        %v805 = vxor.u32 %v615, 2147483648
        %v806 = vxor.u32 %v621, 2147483648
        %v807 = vxor.u32 %v627, 2147483648
        %v808 = vxor.u32 %v633, 2147483648
        %v809 = vxor.u32 %v639, 2147483648
        %v810 = vxor.u32 %v645, 2147483648
        %v811 = vxor.u32 %v651, 2147483648
        %v812 = vxor.u32 %v657, 2147483648
        %v813 = vxor.u32 %v663, 2147483648
        %v814 = vxor.u32 %v669, 2147483648
        %v815 = vxor.u32 %v675, 2147483648
        %v816 = vxor.u32 %v681, 2147483648
        %v817 = vxor.u32 %v687, 2147483648
        %v818 = vxor.u32 %v693, 2147483648
        %v819 = vxor.u32 %v699, 2147483648
        %v820 = vxor.u32 %v705, 2147483648
        %v821 = vxor.u32 %v711, 2147483648
        %v822 = vxor.u32 %v717, 2147483648
        %v823 = vxor.u32 %v723, 2147483648
        %v824 = vxor.u32 %v729, 2147483648
        %v825 = vxor.u32 %v735, 2147483648
        %v826 = vxor.u32 %v741, 2147483648
        %v827 = vxor.u32 %v747, 2147483648
        %v828 = vxor.u32 %v753, 2147483648
        %v829 = vxor.u32 %v759, 2147483648
        %v830 = vxor.u32 %v765, 2147483648
        %v831 = vxor.u32 %v771, 2147483648
        %v832 = vxor.u32 %v777, 2147483648
        %v833 = vxor.u32 %v783, 2147483648
        %v834 = vxor.u32 %v789, 2147483648
        %v835 = vxor.u32 %v795, 2147483648
        %v836 = vxor.u32 %v801, 2147483648
        %v837 = vmul.f32 %v805, 1.442695
        %v838 = vpow.pop %v837
        %v839 = vmul.f32 %v806, 1.442695
        %v840 = vpow.pop %v839
        %v841 = vmul.f32 %v807, 1.442695
        %v842 = vpow.pop %v841
        %v843 = vmul.f32 %v808, 1.442695
        %v844 = vpow.pop %v843
        %v845 = vmul.f32 %v809, 1.442695
        %v846 = vpow.pop %v845
        %v847 = vmul.f32 %v810, 1.442695
        %v848 = vpow.pop %v847
        %v849 = vmul.f32 %v811, 1.442695
        %v850 = vpow.pop %v849
        %v851 = vmul.f32 %v812, 1.442695
        %v852 = vpow.pop %v851
        %v853 = vmul.f32 %v813, 1.442695
        %v854 = vpow.pop %v853
        %v855 = vmul.f32 %v814, 1.442695
        %v856 = vpow.pop %v855
        %v857 = vmul.f32 %v815, 1.442695
        %v858 = vpow.pop %v857
        %v859 = vmul.f32 %v816, 1.442695
        %v860 = vpow.pop %v859
        %v861 = vmul.f32 %v817, 1.442695
        %v862 = vpow.pop %v861
        %v863 = vmul.f32 %v818, 1.442695
        %v864 = vpow.pop %v863
        %v865 = vmul.f32 %v819, 1.442695
        %v866 = vpow.pop %v865
        %v867 = vmul.f32 %v820, 1.442695
        %v868 = vpow.pop %v867
        %v869 = vmul.f32 %v821, 1.442695
        %v870 = vpow.pop %v869
        %v871 = vmul.f32 %v822, 1.442695
        %v872 = vpow.pop %v871
        %v873 = vmul.f32 %v823, 1.442695
        %v874 = vpow.pop %v873
        %v875 = vmul.f32 %v824, 1.442695
        %v876 = vpow.pop %v875
        %v877 = vmul.f32 %v825, 1.442695
        %v878 = vpow.pop %v877
        %v879 = vmul.f32 %v826, 1.442695
        %v880 = vpow.pop %v879
        %v881 = vmul.f32 %v827, 1.442695
        %v882 = vpow.pop %v881
        %v883 = vmul.f32 %v828, 1.442695
        %v884 = vpow.pop %v883
        %v885 = vmul.f32 %v829, 1.442695
        %v886 = vpow.pop %v885
        %v887 = vmul.f32 %v830, 1.442695
        %v888 = vpow.pop %v887
        %v889 = vmul.f32 %v831, 1.442695
        %v890 = vpow.pop %v889
        %v891 = vmul.f32 %v832, 1.442695
        %v892 = vpow.pop %v891
        %v893 = vmul.f32 %v833, 1.442695
        %v894 = vpow.pop %v893
        %v895 = vmul.f32 %v834, 1.442695
        %v896 = vpow.pop %v895
        %v897 = vmul.f32 %v835, 1.442695
        %v898 = vpow.pop %v897
        %v899 = vmul.f32 %v836, 1.442695
        %v900 = vpow.pop %v899
        %v901 = vadd.f32 %v838, 1.0
        %v902 = vadd.f32 %v840, 1.0
        %v903 = vadd.f32 %v842, 1.0
        %v904 = vadd.f32 %v844, 1.0
        %v905 = vadd.f32 %v846, 1.0
        %v906 = vadd.f32 %v848, 1.0
        %v907 = vadd.f32 %v850, 1.0
        %v908 = vadd.f32 %v852, 1.0
        %v909 = vadd.f32 %v854, 1.0
        %v910 = vadd.f32 %v856, 1.0
        %v911 = vadd.f32 %v858, 1.0
        %v912 = vadd.f32 %v860, 1.0
        %v913 = vadd.f32 %v862, 1.0
        %v914 = vadd.f32 %v864, 1.0
        %v915 = vadd.f32 %v866, 1.0
        %v916 = vadd.f32 %v868, 1.0
        %v917 = vadd.f32 %v870, 1.0
        %v918 = vadd.f32 %v872, 1.0
        %v919 = vadd.f32 %v874, 1.0
        %v920 = vadd.f32 %v876, 1.0
        %v921 = vadd.f32 %v878, 1.0
        %v922 = vadd.f32 %v880, 1.0
        %v923 = vadd.f32 %v882, 1.0
        %v924 = vadd.f32 %v884, 1.0
        %v925 = vadd.f32 %v886, 1.0
        %v926 = vadd.f32 %v888, 1.0
        %v927 = vadd.f32 %v890, 1.0
        %v928 = vadd.f32 %v892, 1.0
        %v929 = vadd.f32 %v894, 1.0
        %v930 = vadd.f32 %v896, 1.0
        %v931 = vadd.f32 %v898, 1.0
        %v932 = vadd.f32 %v900, 1.0
        %v933 = vrcp.pop %v901
        %v934 = vmul.f32 1.0, %v933
        %v935 = vrcp.pop %v902
        %v936 = vmul.f32 1.0, %v935
        %v937 = vrcp.pop %v903
        %v938 = vmul.f32 1.0, %v937
        %v939 = vrcp.pop %v904
        %v940 = vmul.f32 1.0, %v939
        %v941 = vrcp.pop %v905
        %v942 = vmul.f32 1.0, %v941
        %v943 = vrcp.pop %v906
        %v944 = vmul.f32 1.0, %v943
        %v945 = vrcp.pop %v907
        %v946 = vmul.f32 1.0, %v945
        %v947 = vrcp.pop %v908
        %v948 = vmul.f32 1.0, %v947
        %v949 = vrcp.pop %v909
        %v950 = vmul.f32 1.0, %v949
        %v951 = vrcp.pop %v910
        %v952 = vmul.f32 1.0, %v951
        %v953 = vrcp.pop %v911
        %v954 = vmul.f32 1.0, %v953
        %v955 = vrcp.pop %v912
        %v956 = vmul.f32 1.0, %v955
        %v957 = vrcp.pop %v913
        %v958 = vmul.f32 1.0, %v957
        %v959 = vrcp.pop %v914
        %v960 = vmul.f32 1.0, %v959
        %v961 = vrcp.pop %v915
        %v962 = vmul.f32 1.0, %v961
        %v963 = vrcp.pop %v916
        %v964 = vmul.f32 1.0, %v963
        %v965 = vrcp.pop %v917
        %v966 = vmul.f32 1.0, %v965
        %v967 = vrcp.pop %v918
        %v968 = vmul.f32 1.0, %v967
        %v969 = vrcp.pop %v919
        %v970 = vmul.f32 1.0, %v969
        %v971 = vrcp.pop %v920
        %v972 = vmul.f32 1.0, %v971
        %v973 = vrcp.pop %v921
        %v974 = vmul.f32 1.0, %v973
        %v975 = vrcp.pop %v922
        %v976 = vmul.f32 1.0, %v975
        %v977 = vrcp.pop %v923
        %v978 = vmul.f32 1.0, %v977
        %v979 = vrcp.pop %v924
        %v980 = vmul.f32 1.0, %v979
        %v981 = vrcp.pop %v925
        %v982 = vmul.f32 1.0, %v981
        %v983 = vrcp.pop %v926
        %v984 = vmul.f32 1.0, %v983
        %v985 = vrcp.pop %v927
        %v986 = vmul.f32 1.0, %v985
        %v987 = vrcp.pop %v928
        %v988 = vmul.f32 1.0, %v987
        %v989 = vrcp.pop %v929
        %v990 = vmul.f32 1.0, %v989
        %v991 = vrcp.pop %v930
        %v992 = vmul.f32 1.0, %v991
        %v993 = vrcp.pop %v931
        %v994 = vmul.f32 1.0, %v993
        %v995 = vrcp.pop %v932
        %v996 = vmul.f32 1.0, %v995
        %v997 = vld [vmem:[%s206] sm:$0xff]
        %v998 = vld [vmem:[%s206 + $0x8] sm:$0xff]
        %v999 = vld [vmem:[%s206 + $0x10] sm:$0xff]
        %v1000 = vld [vmem:[%s206 + $0x18] sm:$0xff]
        %v1001 = vld [vmem:[%s206 + $0x20] sm:$0xff]
        %v1002 = vld [vmem:[%s206 + $0x28] sm:$0xff]
        %v1003 = vld [vmem:[%s206 + $0x30] sm:$0xff]
        %v1004 = vld [vmem:[%s206 + $0x38] sm:$0xff]
        %v1005 = vld [vmem:[%s206 + $0x40] sm:$0xff]
        %v1006 = vld [vmem:[%s206 + $0x48] sm:$0xff]
        %v1007 = vld [vmem:[%s206 + $0x50] sm:$0xff]
        %v1008 = vld [vmem:[%s206 + $0x58] sm:$0xff]
        %v1009 = vld [vmem:[%s206 + $0x60] sm:$0xff]
        %v1010 = vld [vmem:[%s206 + $0x68] sm:$0xff]
        %v1011 = vld [vmem:[%s206 + $0x70] sm:$0xff]
        %v1012 = vld [vmem:[%s206 + $0x78] sm:$0xff]
        %v1013 = vld [vmem:[%s206 + $0x80] sm:$0xff]
        %v1014 = vld [vmem:[%s206 + $0x88] sm:$0xff]
        %v1015 = vld [vmem:[%s206 + $0x90] sm:$0xff]
        %v1016 = vld [vmem:[%s206 + $0x98] sm:$0xff]
        %v1017 = vld [vmem:[%s206 + $0xa0] sm:$0xff]
        %v1018 = vld [vmem:[%s206 + $0xa8] sm:$0xff]
        %v1019 = vld [vmem:[%s206 + $0xb0] sm:$0xff]
        %v1020 = vld [vmem:[%s206 + $0xb8] sm:$0xff]
        %v1021 = vld [vmem:[%s206 + $0xc0] sm:$0xff]
        %v1022 = vld [vmem:[%s206 + $0xc8] sm:$0xff]
        %v1023 = vld [vmem:[%s206 + $0xd0] sm:$0xff]
        %v1024 = vld [vmem:[%s206 + $0xd8] sm:$0xff]
        %v1025 = vld [vmem:[%s206 + $0xe0] sm:$0xff]
        %v1026 = vld [vmem:[%s206 + $0xe8] sm:$0xff]
        %v1027 = vld [vmem:[%s206 + $0xf0] sm:$0xff]
        %v1028 = vld [vmem:[%s206 + $0xf8] sm:$0xff]
        %v1029 = vsub.f32 %v997, %v617
        %v1030 = vsub.f32 %v998, %v623
        %v1031 = vsub.f32 %v999, %v629
        %v1032 = vsub.f32 %v1000, %v635
        %v1033 = vsub.f32 %v1001, %v641
        %v1034 = vsub.f32 %v1002, %v647
        %v1035 = vsub.f32 %v1003, %v653
        %v1036 = vsub.f32 %v1004, %v659
        %v1037 = vsub.f32 %v1005, %v665
        %v1038 = vsub.f32 %v1006, %v671
        %v1039 = vsub.f32 %v1007, %v677
        %v1040 = vsub.f32 %v1008, %v683
        %v1041 = vsub.f32 %v1009, %v689
        %v1042 = vsub.f32 %v1010, %v695
        %v1043 = vsub.f32 %v1011, %v701
        %v1044 = vsub.f32 %v1012, %v707
        %v1045 = vsub.f32 %v1013, %v713
        %v1046 = vsub.f32 %v1014, %v719
        %v1047 = vsub.f32 %v1015, %v725
        %v1048 = vsub.f32 %v1016, %v731
        %v1049 = vsub.f32 %v1017, %v737
        %v1050 = vsub.f32 %v1018, %v743
        %v1051 = vsub.f32 %v1019, %v749
        %v1052 = vsub.f32 %v1020, %v755
        %v1053 = vsub.f32 %v1021, %v761
        %v1054 = vsub.f32 %v1022, %v767
        %v1055 = vsub.f32 %v1023, %v773
        %v1056 = vsub.f32 %v1024, %v779
        %v1057 = vsub.f32 %v1025, %v785
        %v1058 = vsub.f32 %v1026, %v791
        %v1059 = vsub.f32 %v1027, %v797
        %v1060 = vsub.f32 %v1028, %v803
        %v1061 = vmul.f32 %v934, %v1029
        %v1062 = vmul.f32 %v936, %v1030
        %v1063 = vmul.f32 %v938, %v1031
        %v1064 = vmul.f32 %v940, %v1032
        %v1065 = vmul.f32 %v942, %v1033
        %v1066 = vmul.f32 %v944, %v1034
        %v1067 = vmul.f32 %v946, %v1035
        %v1068 = vmul.f32 %v948, %v1036
        %v1069 = vmul.f32 %v950, %v1037
        %v1070 = vmul.f32 %v952, %v1038
        %v1071 = vmul.f32 %v954, %v1039
        %v1072 = vmul.f32 %v956, %v1040
        %v1073 = vmul.f32 %v958, %v1041
        %v1074 = vmul.f32 %v960, %v1042
        %v1075 = vmul.f32 %v962, %v1043
        %v1076 = vmul.f32 %v964, %v1044
        %v1077 = vmul.f32 %v966, %v1045
        %v1078 = vmul.f32 %v968, %v1046
        %v1079 = vmul.f32 %v970, %v1047
        %v1080 = vmul.f32 %v972, %v1048
        %v1081 = vmul.f32 %v974, %v1049
        %v1082 = vmul.f32 %v976, %v1050
        %v1083 = vmul.f32 %v978, %v1051
        %v1084 = vmul.f32 %v980, %v1052
        %v1085 = vmul.f32 %v982, %v1053
        %v1086 = vmul.f32 %v984, %v1054
        %v1087 = vmul.f32 %v986, %v1055
        %v1088 = vmul.f32 %v988, %v1056
        %v1089 = vmul.f32 %v990, %v1057
        %v1090 = vmul.f32 %v992, %v1058
        %v1091 = vmul.f32 %v994, %v1059
        %v1092 = vmul.f32 %v996, %v1060
        %v1093 = vadd.f32 %v617, %v1061
        %v1094 = vadd.f32 %v623, %v1062
        %v1095 = vadd.f32 %v629, %v1063
        %v1096 = vadd.f32 %v635, %v1064
        %v1097 = vadd.f32 %v641, %v1065
        %v1098 = vadd.f32 %v647, %v1066
        %v1099 = vadd.f32 %v653, %v1067
        %v1100 = vadd.f32 %v659, %v1068
        %v1101 = vadd.f32 %v665, %v1069
        %v1102 = vadd.f32 %v671, %v1070
        %v1103 = vadd.f32 %v677, %v1071
        %v1104 = vadd.f32 %v683, %v1072
        %v1105 = vadd.f32 %v689, %v1073
        %v1106 = vadd.f32 %v695, %v1074
        %v1107 = vadd.f32 %v701, %v1075
        %v1108 = vadd.f32 %v707, %v1076
        %v1109 = vadd.f32 %v713, %v1077
        %v1110 = vadd.f32 %v719, %v1078
        %v1111 = vadd.f32 %v725, %v1079
        %v1112 = vadd.f32 %v731, %v1080
        %v1113 = vadd.f32 %v737, %v1081
        %v1114 = vadd.f32 %v743, %v1082
        %v1115 = vadd.f32 %v749, %v1083
        %v1116 = vadd.f32 %v755, %v1084
        %v1117 = vadd.f32 %v761, %v1085
        %v1118 = vadd.f32 %v767, %v1086
        %v1119 = vadd.f32 %v773, %v1087
        %v1120 = vadd.f32 %v779, %v1088
        %v1121 = vadd.f32 %v785, %v1089
        %v1122 = vadd.f32 %v791, %v1090
        %v1123 = vadd.f32 %v797, %v1091
        %v1124 = vadd.f32 %v803, %v1092
        %1125 = vst [vmem:[%s195] sm:$0xff] %v1093
        %1126 = vst [vmem:[%s195 + $0x8] sm:$0xff] %v1094
        %1127 = vst [vmem:[%s195 + $0x10] sm:$0xff] %v1095
        %1128 = vst [vmem:[%s195 + $0x18] sm:$0xff] %v1096
        %1129 = vst [vmem:[%s195 + $0x20] sm:$0xff] %v1097
        %1130 = vst [vmem:[%s195 + $0x28] sm:$0xff] %v1098
        %1131 = vst [vmem:[%s195 + $0x30] sm:$0xff] %v1099
        %1132 = vst [vmem:[%s195 + $0x38] sm:$0xff] %v1100
        %1133 = vst [vmem:[%s195 + $0x40] sm:$0xff] %v1101
        %1134 = vst [vmem:[%s195 + $0x48] sm:$0xff] %v1102
        %1135 = vst [vmem:[%s195 + $0x50] sm:$0xff] %v1103
        %1136 = vst [vmem:[%s195 + $0x58] sm:$0xff] %v1104
        %1137 = vst [vmem:[%s195 + $0x60] sm:$0xff] %v1105
        %1138 = vst [vmem:[%s195 + $0x68] sm:$0xff] %v1106
        %1139 = vst [vmem:[%s195 + $0x70] sm:$0xff] %v1107
        %1140 = vst [vmem:[%s195 + $0x78] sm:$0xff] %v1108
        %1141 = vst [vmem:[%s195 + $0x80] sm:$0xff] %v1109
        %1142 = vst [vmem:[%s195 + $0x88] sm:$0xff] %v1110
        %1143 = vst [vmem:[%s195 + $0x90] sm:$0xff] %v1111
        %1144 = vst [vmem:[%s195 + $0x98] sm:$0xff] %v1112
        %1145 = vst [vmem:[%s195 + $0xa0] sm:$0xff] %v1113
        %1146 = vst [vmem:[%s195 + $0xa8] sm:$0xff] %v1114
        %1147 = vst [vmem:[%s195 + $0xb0] sm:$0xff] %v1115
        %1148 = vst [vmem:[%s195 + $0xb8] sm:$0xff] %v1116
        %1149 = vst [vmem:[%s195 + $0xc0] sm:$0xff] %v1117
        %1150 = vst [vmem:[%s195 + $0xc8] sm:$0xff] %v1118
        %1151 = vst [vmem:[%s195 + $0xd0] sm:$0xff] %v1119
        %1152 = vst [vmem:[%s195 + $0xd8] sm:$0xff] %v1120
        %1153 = vst [vmem:[%s195 + $0xe0] sm:$0xff] %v1121
        %1154 = vst [vmem:[%s195 + $0xe8] sm:$0xff] %v1122
        %1155 = vst [vmem:[%s195 + $0xf0] sm:$0xff] %v1123
        %1156 = vst [vmem:[%s195 + $0xf8] sm:$0xff] %v1124
        %s1157 = sand.u32 %s99, 1
        %s1158 = scalar_lea.sflag [#allocation4], %s1157
        %s1159 = sand.u32 %s99, 1
        %s1160 = smul.addr %s1159, 256
        %s1161 = scalar_lea.vmem [#allocation5], %s1160
        // Predicated region
        $region37: #{tpu_custom_call.1} parent=31 // pred_check
          %p1162 = pneg %p109
        $region38: #{tpu_custom_call.1} parent=31 // pred_check_branch
          %1164 = sbr.rel (%p1162) target = $region40
        $region39: #{tpu_custom_call.1} parent=31 // pred_region
          %s1165 = smul.u32 32, %s18
          %s1167 = ssub.s32 4096, 4096
          %1168 = vsyncadd %s1158, %s1167
          %s1169 = smul.addr %s1165, 128
          %s1170 = scalar_lea.hbm %s3, %s1169
          %s1171 = sshll.u32 %s1161, 4
          %s1172 = int_to_ptr.vmem [resolvable:$true] %s1171
          %1177 = dma.vmem_to_hbm [thread:$0]  %s1172, 4096, %s1170, %s1158, 128, 128, 8
        $region40: #{tpu_custom_call.1} parent=31 // pred_fallthru
          _
      $region32: #{tpu_custom_call.1} parent=5 // pred_fallthru
        _
      %p1178 = scmp.le.s32.totalorder 2, %s13
      // Predicated region
      $region41: #{tpu_custom_call.1} parent=5 // pred_check
        %p1179 = pneg %p1178
      $region42: #{tpu_custom_call.1} parent=5 // pred_check_branch
        %1181 = sbr.rel (%p1179) target = $region44
      $region43: #{tpu_custom_call.1} parent=5 // pred_region
        %s1182 = ssub.s32 %s13, 2
        // Predicated region
        $region45: #{tpu_custom_call.1} parent=43 // pred_check
          %p1183 = pneg %p115
        $region46: #{tpu_custom_call.1} parent=43 // pred_check_branch
          %1185 = sbr.rel (%p1183) target = $region48
        $region47: #{tpu_custom_call.1} parent=43 // pred_region
          %s1186 = sand.u32 %s100, 1
          %s1187 = scalar_lea.sflag [#allocation4], %s1186
          %s1188 = sand.u32 %s100, 1
          %s1189 = smul.addr %s1188, 256
          %s1190 = scalar_lea.vmem [#allocation5], %s1189
          %1191 = dma.done %s1187, 4096
        $region48: #{tpu_custom_call.1} parent=43 // pred_fallthru
          _
      $region44: #{tpu_custom_call.1} parent=5 // pred_fallthru
        _
    $region6: #{tpu_custom_call.1} parent=1 // loop_footer
      %s17 = sadd.s32 1, %s13
    $region7: #{tpu_custom_call.1} parent=1 // loop_footer_branch
      %12 = sbr.rel target = $region3
    $region8: #{tpu_custom_call.1} parent=1 // loop_exit
      _
    %1192 = vsyncpa [#allocation3], 1
    %s1193 = scalar_lea.sflag [#allocation3], 1
    %1194 = vsyncpa %s1193, 1
    %1195 = vsyncpa [#allocation4], 1
    %s1196 = scalar_lea.sflag [#allocation4], 1
    %1197 = vsyncpa %s1196, 1

</llo_original>
